<compile_context>
chip_gen: v5e
topology: v5e:2x2
jax: 0.10.0
libtpu: 0.0.40
codegen_flags: <defaults>
</compile_context>

<pallas_src>
import functools
import math

import jax
import jax.numpy as jnp
from jax.experimental import pallas as pl
from jax.experimental.pallas import tpu as pltpu


def _round_up(x, m):
    return ((x + m - 1) // m) * m


def _pick_tile(dim, pref, align):
    """Pick (tile, padded_dim) for one axis.

    Preference order: full dim (no tiling, always legal), then the largest
    `align`-multiple <= pref that exactly divides dim (no padding), then fall
    back to padding dim up to a multiple of pref.
    """
    if dim <= pref:
        return dim, dim
    floor = max(align, pref // 4)
    t = (pref // align) * align
    while t >= floor:
        if dim % t == 0:
            return t, dim
        t -= align
    return pref, _round_up(dim, pref)


# ----------------------------- Pallas kernels -----------------------------

def _gemm_kernel(*refs, nk, gelu, has_bias, fuse_ln, eps):
    """out[g] = x @ w[g] (+ b[g]) with optional GELU or residual+LayerNorm epilogue.

    Grid = (G, M/tm, N/tn, K/tk). K is innermost (reduction) and accumulates
    into a float32 VMEM scratch; the output tile is written on the last K step.
    MXU operands are cast to bf16, accumulation stays f32.
    """
    idx = 0
    x_ref = refs[idx]; idx += 1
    w_ref = refs[idx]; idx += 1
    b_ref = None
    if has_bias:
        b_ref = refs[idx]; idx += 1
    r_ref = g_ref = be_ref = None
    if fuse_ln:
        r_ref, g_ref, be_ref = refs[idx], refs[idx + 1], refs[idx + 2]
        idx += 3
    o_ref, acc_ref = refs[idx], refs[idx + 1]

    kk = pl.program_id(3)

    @pl.when(kk == 0)
    def _init():
        acc_ref[...] = jnp.zeros_like(acc_ref)

    acc_ref[...] += jnp.dot(x_ref[...].astype(jnp.bfloat16),
                            w_ref[0].astype(jnp.bfloat16),
                            preferred_element_type=jnp.float32)

    @pl.when(kk == nk - 1)
    def _finalize():
        y = acc_ref[...]
        if has_bias:
            y = y + b_ref[0].astype(jnp.float32)
        if gelu:
            # exact GELU (erf), matching torch.nn.GELU default
            y = 0.5 * y * (1.0 + jax.lax.erf(y * (1.0 / math.sqrt(2.0))))
        if fuse_ln:
            # fused residual add + LayerNorm (one-pass stats, biased variance)
            y = y + r_ref[...].astype(jnp.float32)
            mu = jnp.mean(y, axis=-1, keepdims=True)
            ms = jnp.mean(y * y, axis=-1, keepdims=True)
            var = ms - mu * mu
            y = (y - mu) * jax.lax.rsqrt(var + eps)
            y = y * g_ref[...].astype(jnp.float32) + be_ref[...].astype(jnp.float32)
        o_ref[0] = y.astype(o_ref.dtype)


def _attention_kernel(qkv_ref, o_ref, *, head_num, scale):
    """All heads of one batch element per grid step.

    qkv_ref block is (3, 1, T, E), last dim already head-major (h, d): the head
    split is a static lane slice and each head's context is written directly
    into its output lane slice (layout 'b t (h d)') -- no concatenation, only
    one head's context is live at a time.
    """
    q = qkv_ref[0, 0]
    k = qkv_ref[1, 0]
    v = qkv_ref[2, 0]
    T, E = q.shape
    d = E // head_num
    for h in range(head_num):
        lo = h * d
        qh = q[:, lo:lo + d].astype(jnp.bfloat16)
        kh = k[:, lo:lo + d].astype(jnp.bfloat16)
        vh = v[:, lo:lo + d].astype(jnp.bfloat16)
        s = jax.lax.dot_general(qh, kh, (((1,), (1,)), ((), ())),
                                preferred_element_type=jnp.float32) * scale
        s = s - jnp.max(s, axis=-1, keepdims=True)
        p = jnp.exp(s)
        p = p / jnp.sum(p, axis=-1, keepdims=True)          # exact divide
        ctx = jnp.dot(p.astype(jnp.bfloat16), vh,
                      preferred_element_type=jnp.float32)
        o_ref[0, :, lo:lo + d] = ctx.astype(o_ref.dtype)


# ----------------------------- kernel wrappers -----------------------------

def pallas_gemm(x2d, w, b=None, *, gelu=False,
                residual=None, ln_gamma=None, ln_beta=None, eps=1e-5,
                tm=512, tn=512, tk=512):
    """Tiled GEMM. w: (K, N) -> (M, N), or (G, K, N) -> (G, M, N).

    Optional epilogues: bias, exact GELU, or fused residual-add + LayerNorm
    (requires a full-row output tile, i.e. tn_ == N, and G == 1).
    """
    squeeze = (w.ndim == 2)
    if squeeze:
        w = w[None]
    G, K, N = w.shape
    M = x2d.shape[0]
    has_bias = b is not None
    fuse_ln = residual is not None
    assert not (fuse_ln and G != 1), "fused LayerNorm only for 2D weights"

    tm_, Mp = _pick_tile(M, tm, 8)
    tk_, Kp = _pick_tile(K, tk, 128)
    if fuse_ln:
        tn_, Np = N, N        # LN needs the whole feature dim in one tile
    else:
        tn_, Np = _pick_tile(N, tn, 128)

    xp = x2d if (Mp == M and Kp == K) else jnp.pad(x2d, ((0, Mp - M), (0, Kp - K)))
    wp = w if (Kp == K and Np == N) else jnp.pad(w, ((0, 0), (0, Kp - K), (0, Np - N)))

    args = [xp, wp]
    in_specs = [
        pl.BlockSpec((tm_, tk_), lambda g, i, j, k: (i, k)),
        pl.BlockSpec((1, tk_, tn_), lambda g, i, j, k: (g, k, j)),
    ]
    if has_bias:
        bp = b.reshape(G, 1, N)
        if Np != N:
            bp = jnp.pad(bp, ((0, 0), (0, 0), (0, Np - N)))
        args.append(bp)
        in_specs.append(pl.BlockSpec((1, 1, tn_), lambda g, i, j, k: (g, 0, j)))
    if fuse_ln:
        rp = residual if Mp == M else jnp.pad(residual, ((0, Mp - M), (0, 0)))
        args += [rp, ln_gamma.reshape(1, N), ln_beta.reshape(1, N)]
        in_specs += [
            pl.BlockSpec((tm_, tn_), lambda g, i, j, k: (i, j)),
            pl.BlockSpec((1, tn_), lambda g, i, j, k: (0, 0)),
            pl.BlockSpec((1, tn_), lambda g, i, j, k: (0, 0)),
        ]

    nk = Kp // tk_
    kernel = functools.partial(_gemm_kernel, nk=nk, gelu=gelu,
                               has_bias=has_bias, fuse_ln=fuse_ln, eps=eps)
    out = pl.pallas_call(
        kernel,
        out_shape=jax.ShapeDtypeStruct((G, Mp, Np), x2d.dtype),
        grid=(G, Mp // tm_, Np // tn_, nk),
        in_specs=in_specs,
        out_specs=pl.BlockSpec((1, tm_, tn_), lambda g, i, j, k: (g, i, j)),
        scratch_shapes=[pltpu.VMEM((tm_, tn_), jnp.float32)],
        compiler_params=pltpu.CompilerParams(
            dimension_semantics=("parallel", "parallel", "parallel", "arbitrary"),
            vmem_limit_bytes=48 * 1024 * 1024,
        ),
        cost_estimate=pl.CostEstimate(
            flops=2 * G * Mp * Np * Kp,
            transcendentals=(G * Mp * Np if gelu else 0),
            bytes_accessed=4 * (Mp * Kp + G * Kp * Np + G * Mp * Np),
        ),
    )(*args)
    if Mp != M or Np != N:
        out = out[:, :M, :N]
    return out[0] if squeeze else out


def pallas_attention(qkv3, head_num, scale):
    """qkv3: (3, B, T, E) head-major qkv; returns (B, T, E) context 'b t (h d)'."""
    _, B, T, E = qkv3.shape
    kernel = functools.partial(_attention_kernel, head_num=head_num, scale=scale)
    return pl.pallas_call(
        kernel,
        out_shape=jax.ShapeDtypeStruct((B, T, E), qkv3.dtype),
        grid=(B,),
        in_specs=[pl.BlockSpec((3, 1, T, E), lambda b: (0, b, 0, 0))],
        out_specs=pl.BlockSpec((1, T, E), lambda b: (b, 0, 0)),
        compiler_params=pltpu.CompilerParams(
            dimension_semantics=("parallel",),
            vmem_limit_bytes=48 * 1024 * 1024,
        ),
    )(qkv3)


# ----------------------------- parameter prep -----------------------------

def _permute_qkv_weight(qkv_w, head_num):
    """(E, 3E) PyTorch-layout qkv weight -> (3, E, E) with head-major columns.

    Original columns follow 'b t (d k h)' (d outermost); the new layout orders
    columns as (k, h, d) so q/k/v are contiguous and each head is a contiguous
    d-wide lane slice.
    """
    E = qkv_w.shape[0]
    d = E // head_num
    dd = jnp.arange(d)
    kk = jnp.arange(3)
    hh = jnp.arange(head_num)
    old_col = (dd[None, None, :] * (3 * head_num)
               + kk[:, None, None] * head_num
               + hh[None, :, None]).reshape(-1)        # (3*H*d,) in (k, h, d) order
    w_perm = qkv_w[:, old_col]                         # (E, 3E)
    return w_perm.reshape(E, 3, E).transpose(1, 0, 2)  # (3, E_in, E_out)


def prepare_params(params, head_num):
    """One-time (outside jit) conversion of qkv weights to the fused layout."""
    new = dict(params)
    blocks = []
    for blk in params["blocks"]:
        nb = dict(blk)
        nb["qkv_w3"] = _permute_qkv_weight(nb.pop("qkv_w"), head_num)
        blocks.append(nb)
    new["blocks"] = blocks
    return new


# ----------------------------- ViT forward -----------------------------

def encoder_block(p, x, head_num):
    B, T, E = x.shape
    x2d = x.reshape(B * T, E)

    # --- MultiHeadAttention (qkv / out projections have no bias) ---
    qkv3 = pallas_gemm(x2d, p["qkv_w3"])                 # (3, B*T, E)
    qkv3 = qkv3.reshape(3, B, T, E)
    scale = (E // head_num) ** 1 / 2                     # replicate PyTorch quirk: head_dim/2
    ctx = pallas_attention(qkv3, head_num, scale)        # (B, T, E) == 'b t (h d)'

    # out-projection with fused residual + LayerNorm1 (dropout = identity)
    x2d = pallas_gemm(ctx.reshape(B * T, E), p["out_w"],
                      residual=x2d, ln_gamma=p["ln1_g"], ln_beta=p["ln1_b"])

    # --- MLP: Linear -> GELU -> (Dropout) -> Linear(+residual+LN2) -> (Dropout) ---
    h1 = pallas_gemm(x2d, p["w1"], p["b1"], gelu=True)
    x2d = pallas_gemm(h1, p["w2"], p["b2"],
                      residual=x2d, ln_gamma=p["ln2_g"], ln_beta=p["ln2_b"])
    return x2d.reshape(B, T, E)


def vit_forward(params, x, *, patch_dim, head_num):
    B, C, H, W = x.shape
    P = patch_dim
    nx, ny = H // P, W // P
    E = params["proj_w"].shape[1]

    # rearrange 'b c (patch_x x) (patch_y y) -> b (x y) (patch_x patch_y c)'
    patches = x.reshape(B, C, P, nx, P, ny)
    patches = patches.transpose(0, 3, 5, 2, 4, 1)        # (b, x, y, px, py, c)
    patches = patches.reshape(B, nx * ny, P * P * C)
    T0 = nx * ny

    proj = pallas_gemm(patches.reshape(B * T0, P * P * C),
                       params["proj_w"], params["proj_b"]).reshape(B, T0, E)

    cls = jnp.broadcast_to(params["cls_token"], (B, 1, E))
    seq = jnp.concatenate([cls, proj], axis=1)           # (B, T0+1, E)
    seq = seq + params["embedding"][: T0 + 1, :]
    # dropout -> identity (eval)

    for blk in params["blocks"]:
        seq = encoder_block(blk, seq, head_num)

    return seq[:, 1:, :]                                 # classification=False


# ----------------------------- parameter init -----------------------------

def init_params(key, *, img_dim, in_channels, embedding_dim, head_num,
                mlp_dim, block_num, patch_dim):
    num_tokens = (img_dim // patch_dim) ** 2
    token_dim = in_channels * patch_dim ** 2
    E = embedding_dim
    keys = jax.random.split(key, 4 + 8 * block_num)
    ki = iter(keys)

    def w(k, shape, scale=0.02):
        return jax.random.normal(k, shape, jnp.float32) * scale

    params = {
        "proj_w": w(next(ki), (token_dim, E)),
        "proj_b": jnp.zeros((E,), jnp.float32),
        "embedding": jax.random.uniform(next(ki), (num_tokens + 1, E), jnp.float32),
        "cls_token": jax.random.normal(next(ki), (1, 1, E), jnp.float32),
        "blocks": [],
    }
    _ = next(ki)
    for _b in range(block_num):
        blk = {
            "qkv_w": w(next(ki), (E, 3 * E)),
            "out_w": w(next(ki), (E, E)),
            "w1": w(next(ki), (E, mlp_dim)),
            "b1": jnp.zeros((mlp_dim,), jnp.float32),
            "w2": w(next(ki), (mlp_dim, E)),
            "b2": jnp.zeros((E,), jnp.float32),
            "ln1_g": jnp.ones((E,), jnp.float32),
            "ln1_b": jnp.zeros((E,), jnp.float32),
            "ln2_g": jnp.ones((E,), jnp.float32),
            "ln2_b": jnp.zeros((E,), jnp.float32),
        }
        _ = next(ki); _ = next(ki); _ = next(ki); _ = next(ki)
        params["blocks"].append(blk)
    return params


# ----------------------------- main -----------------------------

if __name__ == "__main__":
    # Small but consistent shapes:
    #   img_dim=16, in_channels=4, patch_dim=4 -> num_tokens=16, token_dim=64
    #   embedding_dim=32, head_num=2, mlp_dim=64, block_num=2
    img_dim, in_channels, patch_dim = 16, 4, 4
    embedding_dim, head_num, mlp_dim, block_num = 32, 2, 64, 2
    batch = 2

    key = jax.random.PRNGKey(0)
    kx, kp = jax.random.split(key)
    x = jax.random.normal(kx, (batch, in_channels, img_dim, img_dim), jnp.float32)
    params = init_params(kp, img_dim=img_dim, in_channels=in_channels,
                         embedding_dim=embedding_dim, head_num=head_num,
                         mlp_dim=mlp_dim, block_num=block_num, patch_dim=patch_dim)
    params = prepare_params(params, head_num)            # one-time qkv weight re-layout

    fwd = jax.jit(functools.partial(vit_forward, patch_dim=patch_dim, head_num=head_num))
    out = fwd(params, x)
    jax.block_until_ready(out)

    expected_tokens = (img_dim // patch_dim) ** 2
    assert out.shape == (batch, expected_tokens, embedding_dim), out.shape
    assert bool(jnp.all(jnp.isfinite(out)))
    print("KERNEL_OK")
</pallas_src>

<mosaic_0001>
module attributes {stable_mosaic.version = 11 : i64} {
  func.func @_gemm_kernel(%arg0: i32, %arg1: i32, %arg2: i32, %arg3: i32, %arg4: memref<32x64xf32, #tpu.memory_space<vmem>>, %arg5: memref<1x64x32xf32, #tpu.memory_space<vmem>>, %arg6: memref<1x1x32xf32, #tpu.memory_space<vmem>>, %arg7: memref<1x32x32xf32, #tpu.memory_space<vmem>>, %arg8: memref<32x32xf32, #tpu.memory_space<vmem>>) attributes {dimension_semantics = [#tpu.dimension_semantics<parallel>, #tpu.dimension_semantics<parallel>, #tpu.dimension_semantics<parallel>, #tpu.dimension_semantics<arbitrary>], iteration_bounds = array<i64: 1, 1, 1, 1>, scalar_prefetch = 0 : i64, scratch_operands = 1 : i64, tpu.core_type = #tpu.core_type<tc>, window_params = [{transform_indices = @transform_0, window_bounds = array<i64: 32, 64>}, {transform_indices = @transform_1, window_bounds = array<i64: 1, 64, 32>}, {transform_indices = @transform_2, window_bounds = array<i64: 1, 1, 32>}, {transform_indices = @transform_3, window_bounds = array<i64: 1, 32, 32>}]} {
    %c0_i32 = arith.constant 0 : i32
    %0 = arith.cmpi eq, %arg3, %c0_i32 : i32
    %1 = arith.extui %0 : i1 to i32
    %c0_i32_0 = arith.constant 0 : i32
    %2 = arith.cmpi ne, %1, %c0_i32_0 : i32
    scf.if %2 {
      %cst_11 = arith.constant 0.000000e+00 : f32
      %15 = vector.broadcast %cst_11 : f32 to vector<32x32xf32>
      %c0_12 = arith.constant 0 : index
      %c0_13 = arith.constant 0 : index
      %16 = vector.load %arg8[%c0_12, %c0_13] : memref<32x32xf32, #tpu.memory_space<vmem>>, vector<32x32xf32>
      tpu.vector_store %arg8[%c0_12, %c0_13], %15 {strides = array<i32>} : memref<32x32xf32, #tpu.memory_space<vmem>>, vector<32x32xf32>,
    } else {
    }
    %c0 = arith.constant 0 : index
    %c0_1 = arith.constant 0 : index
    %3 = vector.load %arg8[%c0, %c0_1] : memref<32x32xf32, #tpu.memory_space<vmem>>, vector<32x32xf32>
    %c0_2 = arith.constant 0 : index
    %c0_3 = arith.constant 0 : index
    %4 = vector.load %arg4[%c0_2, %c0_3] : memref<32x64xf32, #tpu.memory_space<vmem>>, vector<32x64xf32>
    %5 = arith.truncf %4 : vector<32x64xf32> to vector<32x64xbf16>
    %c0_4 = arith.constant 0 : index
    %c0_5 = arith.constant 0 : index
    %c0_6 = arith.constant 0 : index
    %6 = vector.load %arg5[%c0_4, %c0_5, %c0_6] : memref<1x64x32xf32, #tpu.memory_space<vmem>>, vector<1x64x32xf32>
    %7 = vector.shape_cast %6 : vector<1x64x32xf32> to vector<64x32xf32>
    %8 = arith.truncf %7 : vector<64x32xf32> to vector<64x32xbf16>
    %cst = arith.constant dense<0.000000e+00> : vector<32x32xf32>
    %9 = tpu.matmul %5, %8, %cst {dimension_numbers = #tpu.dot_dimension_numbers<[1], [0], [0], [1], [0, 0, 1, 1], [], []>} : vector<32x64xbf16>, vector<64x32xbf16>, vector<32x32xf32> -> vector<32x32xf32>
    %10 = arith.addf %3, %9 : vector<32x32xf32>
    %c0_7 = arith.constant 0 : index
    %c0_8 = arith.constant 0 : index
    %11 = vector.load %arg8[%c0_7, %c0_8] : memref<32x32xf32, #tpu.memory_space<vmem>>, vector<32x32xf32>
    tpu.vector_store %arg8[%c0_7, %c0_8], %10 {strides = array<i32>} : memref<32x32xf32, #tpu.memory_space<vmem>>, vector<32x32xf32>,
    %c0_i32_9 = arith.constant 0 : i32
    %12 = arith.cmpi eq, %arg3, %c0_i32_9 : i32
    %13 = arith.extui %12 : i1 to i32
    %c0_i32_10 = arith.constant 0 : i32
    %14 = arith.cmpi ne, %13, %c0_i32_10 : i32
    scf.if %14 {
      %c0_11 = arith.constant 0 : index
      %c0_12 = arith.constant 0 : index
      %15 = vector.load %arg8[%c0_11, %c0_12] : memref<32x32xf32, #tpu.memory_space<vmem>>, vector<32x32xf32>
      %c0_13 = arith.constant 0 : index
      %c0_14 = arith.constant 0 : index
      %c0_15 = arith.constant 0 : index
      %16 = vector.load %arg6[%c0_13, %c0_14, %c0_15] : memref<1x1x32xf32, #tpu.memory_space<vmem>>, vector<1x1x32xf32>
      %17 = vector.shape_cast %16 : vector<1x1x32xf32> to vector<1x32xf32>
      %18 = vector.broadcast %17 : vector<1x32xf32> to vector<32x32xf32>
      %19 = arith.addf %15, %18 : vector<32x32xf32>
      %c0_16 = arith.constant 0 : index
      %c0_17 = arith.constant 0 : index
      %c0_18 = arith.constant 0 : index
      %20 = vector.load %arg7[%c0_16, %c0_17, %c0_18] : memref<1x32x32xf32, #tpu.memory_space<vmem>>, vector<1x32x32xf32>
      %21 = vector.shape_cast %20 : vector<1x32x32xf32> to vector<32x32xf32>
      %22 = vector.shape_cast %19 : vector<32x32xf32> to vector<1x32x32xf32>
      tpu.vector_store %arg7[%c0_16, %c0_17, %c0_18], %22 {strides = array<i32>} : memref<1x32x32xf32, #tpu.memory_space<vmem>>, vector<1x32x32xf32>,
    } else {
    }
    return
  }
  func.func @transform_0(%arg0: i32, %arg1: i32, %arg2: i32, %arg3: i32) -> (i32, i32) {
    %c0_i32 = arith.constant 0 : i32
    return %arg1, %arg3 : i32, i32
  }
  func.func @transform_1(%arg0: i32, %arg1: i32, %arg2: i32, %arg3: i32) -> (i32, i32, i32) {
    %c0_i32 = arith.constant 0 : i32
    return %arg0, %arg3, %arg2 : i32, i32, i32
  }
  func.func @transform_2(%arg0: i32, %arg1: i32, %arg2: i32, %arg3: i32) -> (i32, i32, i32) {
    %c0_i32 = arith.constant 0 : i32
    %c0_i32_0 = arith.constant 0 : i32
    return %arg0, %c0_i32, %arg2 : i32, i32, i32
  }
  func.func @transform_3(%arg0: i32, %arg1: i32, %arg2: i32, %arg3: i32) -> (i32, i32, i32) {
    %c0_i32 = arith.constant 0 : i32
    return %arg0, %arg1, %arg2 : i32, i32, i32
  }
}

module attributes {stable_mosaic.version = 11 : i64} {
  func.func @_gemm_kernel(%arg0: i32, %arg1: i32, %arg2: i32, %arg3: i32, %arg4: memref<34x32xf32, #tpu.memory_space<vmem>>, %arg5: memref<1x32x32xf32, #tpu.memory_space<vmem>>, %arg6: memref<1x34x32xf32, #tpu.memory_space<vmem>>, %arg7: memref<34x32xf32, #tpu.memory_space<vmem>>) attributes {dimension_semantics = [#tpu.dimension_semantics<parallel>, #tpu.dimension_semantics<parallel>, #tpu.dimension_semantics<parallel>, #tpu.dimension_semantics<arbitrary>], iteration_bounds = array<i64: 3, 1, 1, 1>, scalar_prefetch = 0 : i64, scratch_operands = 1 : i64, tpu.core_type = #tpu.core_type<tc>, window_params = [{transform_indices = @transform_0, window_bounds = array<i64: 34, 32>}, {transform_indices = @transform_1, window_bounds = array<i64: 1, 32, 32>}, {transform_indices = @transform_2, window_bounds = array<i64: 1, 34, 32>}]} {
    %c0_i32 = arith.constant 0 : i32
    %0 = arith.cmpi eq, %arg3, %c0_i32 : i32
    %1 = arith.extui %0 : i1 to i32
    %c0_i32_0 = arith.constant 0 : i32
    %2 = arith.cmpi ne, %1, %c0_i32_0 : i32
    scf.if %2 {
      %cst_11 = arith.constant 0.000000e+00 : f32
      %15 = vector.broadcast %cst_11 : f32 to vector<34x32xf32>
      %c0_12 = arith.constant 0 : index
      %c0_13 = arith.constant 0 : index
      %16 = vector.load %arg7[%c0_12, %c0_13] : memref<34x32xf32, #tpu.memory_space<vmem>>, vector<34x32xf32>
      tpu.vector_store %arg7[%c0_12, %c0_13], %15 {strides = array<i32>} : memref<34x32xf32, #tpu.memory_space<vmem>>, vector<34x32xf32>,
    } else {
    }
    %c0 = arith.constant 0 : index
    %c0_1 = arith.constant 0 : index
    %3 = vector.load %arg7[%c0, %c0_1] : memref<34x32xf32, #tpu.memory_space<vmem>>, vector<34x32xf32>
    %c0_2 = arith.constant 0 : index
    %c0_3 = arith.constant 0 : index
    %4 = vector.load %arg4[%c0_2, %c0_3] : memref<34x32xf32, #tpu.memory_space<vmem>>, vector<34x32xf32>
    %5 = arith.truncf %4 : vector<34x32xf32> to vector<34x32xbf16>
    %c0_4 = arith.constant 0 : index
    %c0_5 = arith.constant 0 : index
    %c0_6 = arith.constant 0 : index
    %6 = vector.load %arg5[%c0_4, %c0_5, %c0_6] : memref<1x32x32xf32, #tpu.memory_space<vmem>>, vector<1x32x32xf32>
    %7 = vector.shape_cast %6 : vector<1x32x32xf32> to vector<32x32xf32>
    %8 = arith.truncf %7 : vector<32x32xf32> to vector<32x32xbf16>
    %cst = arith.constant dense<0.000000e+00> : vector<34x32xf32>
    %9 = tpu.matmul %5, %8, %cst {dimension_numbers = #tpu.dot_dimension_numbers<[1], [0], [0], [1], [0, 0, 1, 1], [], []>} : vector<34x32xbf16>, vector<32x32xbf16>, vector<34x32xf32> -> vector<34x32xf32>
    %10 = arith.addf %3, %9 : vector<34x32xf32>
    %c0_7 = arith.constant 0 : index
    %c0_8 = arith.constant 0 : index
    %11 = vector.load %arg7[%c0_7, %c0_8] : memref<34x32xf32, #tpu.memory_space<vmem>>, vector<34x32xf32>
    tpu.vector_store %arg7[%c0_7, %c0_8], %10 {strides = array<i32>} : memref<34x32xf32, #tpu.memory_space<vmem>>, vector<34x32xf32>,
    %c0_i32_9 = arith.constant 0 : i32
    %12 = arith.cmpi eq, %arg3, %c0_i32_9 : i32
    %13 = arith.extui %12 : i1 to i32
    %c0_i32_10 = arith.constant 0 : i32
    %14 = arith.cmpi ne, %13, %c0_i32_10 : i32
    scf.if %14 {
      %c0_11 = arith.constant 0 : index
      %c0_12 = arith.constant 0 : index
      %15 = vector.load %arg7[%c0_11, %c0_12] : memref<34x32xf32, #tpu.memory_space<vmem>>, vector<34x32xf32>
      %c0_13 = arith.constant 0 : index
      %c0_14 = arith.constant 0 : index
      %c0_15 = arith.constant 0 : index
      %16 = vector.load %arg6[%c0_13, %c0_14, %c0_15] : memref<1x34x32xf32, #tpu.memory_space<vmem>>, vector<1x34x32xf32>
      %17 = vector.shape_cast %16 : vector<1x34x32xf32> to vector<34x32xf32>
      %18 = vector.shape_cast %15 : vector<34x32xf32> to vector<1x34x32xf32>
      tpu.vector_store %arg6[%c0_13, %c0_14, %c0_15], %18 {strides = array<i32>} : memref<1x34x32xf32, #tpu.memory_space<vmem>>, vector<1x34x32xf32>,
    } else {
    }
    return
  }
  func.func @transform_0(%arg0: i32, %arg1: i32, %arg2: i32, %arg3: i32) -> (i32, i32) {
    %c0_i32 = arith.constant 0 : i32
    return %arg1, %arg3 : i32, i32
  }
  func.func @transform_1(%arg0: i32, %arg1: i32, %arg2: i32, %arg3: i32) -> (i32, i32, i32) {
    %c0_i32 = arith.constant 0 : i32
    return %arg0, %arg3, %arg2 : i32, i32, i32
  }
  func.func @transform_2(%arg0: i32, %arg1: i32, %arg2: i32, %arg3: i32) -> (i32, i32, i32) {
    %c0_i32 = arith.constant 0 : i32
    return %arg0, %arg1, %arg2 : i32, i32, i32
  }
}

module attributes {stable_mosaic.version = 11 : i64} {
  func.func @_attention_kernel(%arg0: i32, %arg1: memref<3x1x17x32xf32, #tpu.memory_space<vmem>>, %arg2: memref<1x17x32xf32, #tpu.memory_space<vmem>>) attributes {dimension_semantics = [#tpu.dimension_semantics<parallel>], iteration_bounds = array<i64: 2>, scalar_prefetch = 0 : i64, scratch_operands = 0 : i64, tpu.core_type = #tpu.core_type<tc>, window_params = [{transform_indices = @transform_0, window_bounds = array<i64: 3, 1, 17, 32>}, {transform_indices = @transform_1, window_bounds = array<i64: 1, 17, 32>}]} {
    %c0 = arith.constant 0 : index
    %c0_0 = arith.constant 0 : index
    %c0_1 = arith.constant 0 : index
    %c0_2 = arith.constant 0 : index
    %0 = vector.load %arg1[%c0, %c0_0, %c0_1, %c0_2] : memref<3x1x17x32xf32, #tpu.memory_space<vmem>>, vector<1x1x17x32xf32>
    %1 = vector.shape_cast %0 : vector<1x1x17x32xf32> to vector<17x32xf32>
    %c1 = arith.constant 1 : index
    %c0_3 = arith.constant 0 : index
    %c0_4 = arith.constant 0 : index
    %c0_5 = arith.constant 0 : index
    %2 = vector.load %arg1[%c1, %c0_3, %c0_4, %c0_5] : memref<3x1x17x32xf32, #tpu.memory_space<vmem>>, vector<1x1x17x32xf32>
    %3 = vector.shape_cast %2 : vector<1x1x17x32xf32> to vector<17x32xf32>
    %c2 = arith.constant 2 : index
    %c0_6 = arith.constant 0 : index
    %c0_7 = arith.constant 0 : index
    %c0_8 = arith.constant 0 : index
    %4 = vector.load %arg1[%c2, %c0_6, %c0_7, %c0_8] : memref<3x1x17x32xf32, #tpu.memory_space<vmem>>, vector<1x1x17x32xf32>
    %5 = vector.shape_cast %4 : vector<1x1x17x32xf32> to vector<17x32xf32>
    %6 = vector.extract_strided_slice %1 {offsets = [0, 0], sizes = [17, 16], strides = [1, 1]} : vector<17x32xf32> to vector<17x16xf32>
    %7 = arith.truncf %6 : vector<17x16xf32> to vector<17x16xbf16>
    %8 = vector.extract_strided_slice %3 {offsets = [0, 0], sizes = [17, 16], strides = [1, 1]} : vector<17x32xf32> to vector<17x16xf32>
    %9 = arith.truncf %8 : vector<17x16xf32> to vector<17x16xbf16>
    %10 = vector.extract_strided_slice %5 {offsets = [0, 0], sizes = [17, 16], strides = [1, 1]} : vector<17x32xf32> to vector<17x16xf32>
    %11 = arith.truncf %10 : vector<17x16xf32> to vector<17x16xbf16>
    %cst = arith.constant dense<0.000000e+00> : vector<17x17xf32>
    %12 = tpu.matmul %7, %9, %cst {dimension_numbers = #tpu.dot_dimension_numbers<[1], [1], [0], [0], [0, 0, 1, 0], [], []>} : vector<17x16xbf16>, vector<17x16xbf16>, vector<17x17xf32> -> vector<17x17xf32>
    %cst_9 = arith.constant 8.000000e+00 : f32
    %13 = vector.broadcast %cst_9 : f32 to vector<17x17xf32>
    %14 = arith.mulf %12, %13 : vector<17x17xf32>
    %cst_10 = arith.constant dense<0xFF800000> : vector<17xf32>
    %15 = vector.multi_reduction <maximumf>, %14, %cst_10 [1] : vector<17x17xf32> to vector<17xf32>
    %16 = vector.shape_cast %15 : vector<17xf32> to vector<17x1xf32>
    %17 = vector.broadcast %16 : vector<17x1xf32> to vector<17x17xf32>
    %18 = arith.subf %14, %17 : vector<17x17xf32>
    %19 = math.exp %18 : vector<17x17xf32>
    %cst_11 = arith.constant dense<0.000000e+00> : vector<17xf32>
    %20 = vector.multi_reduction <add>, %19, %cst_11 [1] : vector<17x17xf32> to vector<17xf32>
    %21 = vector.shape_cast %20 : vector<17xf32> to vector<17x1xf32>
    %22 = vector.broadcast %21 : vector<17x1xf32> to vector<17x17xf32>
    %23 = arith.divf %19, %22 : vector<17x17xf32>
    %24 = arith.truncf %23 : vector<17x17xf32> to vector<17x17xbf16>
    %cst_12 = arith.constant dense<0.000000e+00> : vector<17x16xf32>
    %25 = tpu.matmul %24, %11, %cst_12 {dimension_numbers = #tpu.dot_dimension_numbers<[1], [0], [0], [1], [0, 0, 1, 1], [], []>} : vector<17x17xbf16>, vector<17x16xbf16>, vector<17x16xf32> -> vector<17x16xf32>
    %c0_13 = arith.constant 0 : index
    %c0_14 = arith.constant 0 : index
    %c0_15 = arith.constant 0 : index
    %26 = vector.load %arg2[%c0_13, %c0_14, %c0_15] : memref<1x17x32xf32, #tpu.memory_space<vmem>>, vector<1x17x16xf32>
    %27 = vector.shape_cast %26 : vector<1x17x16xf32> to vector<17x16xf32>
    %28 = vector.shape_cast %25 : vector<17x16xf32> to vector<1x17x16xf32>
    tpu.vector_store %arg2[%c0_13, %c0_14, %c0_15], %28 {strides = array<i32>} : memref<1x17x32xf32, #tpu.memory_space<vmem>>, vector<1x17x16xf32>,
    %29 = vector.extract_strided_slice %1 {offsets = [0, 16], sizes = [17, 16], strides = [1, 1]} : vector<17x32xf32> to vector<17x16xf32>
    %30 = arith.truncf %29 : vector<17x16xf32> to vector<17x16xbf16>
    %31 = vector.extract_strided_slice %3 {offsets = [0, 16], sizes = [17, 16], strides = [1, 1]} : vector<17x32xf32> to vector<17x16xf32>
    %32 = arith.truncf %31 : vector<17x16xf32> to vector<17x16xbf16>
    %33 = vector.extract_strided_slice %5 {offsets = [0, 16], sizes = [17, 16], strides = [1, 1]} : vector<17x32xf32> to vector<17x16xf32>
    %34 = arith.truncf %33 : vector<17x16xf32> to vector<17x16xbf16>
    %cst_16 = arith.constant dense<0.000000e+00> : vector<17x17xf32>
    %35 = tpu.matmul %30, %32, %cst_16 {dimension_numbers = #tpu.dot_dimension_numbers<[1], [1], [0], [0], [0, 0, 1, 0], [], []>} : vector<17x16xbf16>, vector<17x16xbf16>, vector<17x17xf32> -> vector<17x17xf32>
    %cst_17 = arith.constant 8.000000e+00 : f32
    %36 = vector.broadcast %cst_17 : f32 to vector<17x17xf32>
    %37 = arith.mulf %35, %36 : vector<17x17xf32>
    %cst_18 = arith.constant dense<0xFF800000> : vector<17xf32>
    %38 = vector.multi_reduction <maximumf>, %37, %cst_18 [1] : vector<17x17xf32> to vector<17xf32>
    %39 = vector.shape_cast %38 : vector<17xf32> to vector<17x1xf32>
    %40 = vector.broadcast %39 : vector<17x1xf32> to vector<17x17xf32>
    %41 = arith.subf %37, %40 : vector<17x17xf32>
    %42 = math.exp %41 : vector<17x17xf32>
    %cst_19 = arith.constant dense<0.000000e+00> : vector<17xf32>
    %43 = vector.multi_reduction <add>, %42, %cst_19 [1] : vector<17x17xf32> to vector<17xf32>
    %44 = vector.shape_cast %43 : vector<17xf32> to vector<17x1xf32>
    %45 = vector.broadcast %44 : vector<17x1xf32> to vector<17x17xf32>
    %46 = arith.divf %42, %45 : vector<17x17xf32>
    %47 = arith.truncf %46 : vector<17x17xf32> to vector<17x17xbf16>
    %cst_20 = arith.constant dense<0.000000e+00> : vector<17x16xf32>
    %48 = tpu.matmul %47, %34, %cst_20 {dimension_numbers = #tpu.dot_dimension_numbers<[1], [0], [0], [1], [0, 0, 1, 1], [], []>} : vector<17x17xbf16>, vector<17x16xbf16>, vector<17x16xf32> -> vector<17x16xf32>
    %c0_21 = arith.constant 0 : index
    %c0_22 = arith.constant 0 : index
    %c16 = arith.constant 16 : index
    %49 = vector.load %arg2[%c0_21, %c0_22, %c16] : memref<1x17x32xf32, #tpu.memory_space<vmem>>, vector<1x17x16xf32>
    %50 = vector.shape_cast %49 : vector<1x17x16xf32> to vector<17x16xf32>
    %51 = vector.shape_cast %48 : vector<17x16xf32> to vector<1x17x16xf32>
    tpu.vector_store %arg2[%c0_21, %c0_22, %c16], %51 {strides = array<i32>} : memref<1x17x32xf32, #tpu.memory_space<vmem>>, vector<1x17x16xf32>,
    return
  }
  func.func @transform_0(%arg0: i32) -> (i32, i32, i32, i32) {
    %c0_i32 = arith.constant 0 : i32
    %c0_i32_0 = arith.constant 0 : i32
    %c0_i32_1 = arith.constant 0 : i32
    %c0_i32_2 = arith.constant 0 : i32
    return %c0_i32, %arg0, %c0_i32_0, %c0_i32_1 : i32, i32, i32, i32
  }
  func.func @transform_1(%arg0: i32) -> (i32, i32, i32) {
    %c0_i32 = arith.constant 0 : i32
    %c0_i32_0 = arith.constant 0 : i32
    %c0_i32_1 = arith.constant 0 : i32
    return %arg0, %c0_i32, %c0_i32_0 : i32, i32, i32
  }
}

module attributes {stable_mosaic.version = 11 : i64} {
  func.func @_gemm_kernel(%arg0: i32, %arg1: i32, %arg2: i32, %arg3: i32, %arg4: memref<34x32xf32, #tpu.memory_space<vmem>>, %arg5: memref<1x32x32xf32, #tpu.memory_space<vmem>>, %arg6: memref<34x32xf32, #tpu.memory_space<vmem>>, %arg7: memref<1x32xf32, #tpu.memory_space<vmem>>, %arg8: memref<1x32xf32, #tpu.memory_space<vmem>>, %arg9: memref<1x34x32xf32, #tpu.memory_space<vmem>>, %arg10: memref<34x32xf32, #tpu.memory_space<vmem>>) attributes {dimension_semantics = [#tpu.dimension_semantics<parallel>, #tpu.dimension_semantics<parallel>, #tpu.dimension_semantics<parallel>, #tpu.dimension_semantics<arbitrary>], iteration_bounds = array<i64: 1, 1, 1, 1>, scalar_prefetch = 0 : i64, scratch_operands = 1 : i64, tpu.core_type = #tpu.core_type<tc>, window_params = [{transform_indices = @transform_0, window_bounds = array<i64: 34, 32>}, {transform_indices = @transform_1, window_bounds = array<i64: 1, 32, 32>}, {transform_indices = @transform_2, window_bounds = array<i64: 34, 32>}, {pipeline_mode = #tpu.pipeline_mode<synchronous>, transform_indices = @transform_3, window_bounds = array<i64: 1, 32>}, {pipeline_mode = #tpu.pipeline_mode<synchronous>, transform_indices = @transform_4, window_bounds = array<i64: 1, 32>}, {transform_indices = @transform_5, window_bounds = array<i64: 1, 34, 32>}]} {
    %c0_i32 = arith.constant 0 : i32
    %0 = arith.cmpi eq, %arg3, %c0_i32 : i32
    %1 = arith.extui %0 : i1 to i32
    %c0_i32_0 = arith.constant 0 : i32
    %2 = arith.cmpi ne, %1, %c0_i32_0 : i32
    scf.if %2 {
      %cst_11 = arith.constant 0.000000e+00 : f32
      %15 = vector.broadcast %cst_11 : f32 to vector<34x32xf32>
      %c0_12 = arith.constant 0 : index
      %c0_13 = arith.constant 0 : index
      %16 = vector.load %arg10[%c0_12, %c0_13] : memref<34x32xf32, #tpu.memory_space<vmem>>, vector<34x32xf32>
      tpu.vector_store %arg10[%c0_12, %c0_13], %15 {strides = array<i32>} : memref<34x32xf32, #tpu.memory_space<vmem>>, vector<34x32xf32>,
    } else {
    }
    %c0 = arith.constant 0 : index
    %c0_1 = arith.constant 0 : index
    %3 = vector.load %arg10[%c0, %c0_1] : memref<34x32xf32, #tpu.memory_space<vmem>>, vector<34x32xf32>
    %c0_2 = arith.constant 0 : index
    %c0_3 = arith.constant 0 : index
    %4 = vector.load %arg4[%c0_2, %c0_3] : memref<34x32xf32, #tpu.memory_space<vmem>>, vector<34x32xf32>
    %5 = arith.truncf %4 : vector<34x32xf32> to vector<34x32xbf16>
    %c0_4 = arith.constant 0 : index
    %c0_5 = arith.constant 0 : index
    %c0_6 = arith.constant 0 : index
    %6 = vector.load %arg5[%c0_4, %c0_5, %c0_6] : memref<1x32x32xf32, #tpu.memory_space<vmem>>, vector<1x32x32xf32>
    %7 = vector.shape_cast %6 : vector<1x32x32xf32> to vector<32x32xf32>
    %8 = arith.truncf %7 : vector<32x32xf32> to vector<32x32xbf16>
    %cst = arith.constant dense<0.000000e+00> : vector<34x32xf32>
    %9 = tpu.matmul %5, %8, %cst {dimension_numbers = #tpu.dot_dimension_numbers<[1], [0], [0], [1], [0, 0, 1, 1], [], []>} : vector<34x32xbf16>, vector<32x32xbf16>, vector<34x32xf32> -> vector<34x32xf32>
    %10 = arith.addf %3, %9 : vector<34x32xf32>
    %c0_7 = arith.constant 0 : index
    %c0_8 = arith.constant 0 : index
    %11 = vector.load %arg10[%c0_7, %c0_8] : memref<34x32xf32, #tpu.memory_space<vmem>>, vector<34x32xf32>
    tpu.vector_store %arg10[%c0_7, %c0_8], %10 {strides = array<i32>} : memref<34x32xf32, #tpu.memory_space<vmem>>, vector<34x32xf32>,
    %c0_i32_9 = arith.constant 0 : i32
    %12 = arith.cmpi eq, %arg3, %c0_i32_9 : i32
    %13 = arith.extui %12 : i1 to i32
    %c0_i32_10 = arith.constant 0 : i32
    %14 = arith.cmpi ne, %13, %c0_i32_10 : i32
    scf.if %14 {
      %c0_11 = arith.constant 0 : index
      %c0_12 = arith.constant 0 : index
      %15 = vector.load %arg10[%c0_11, %c0_12] : memref<34x32xf32, #tpu.memory_space<vmem>>, vector<34x32xf32>
      %c0_13 = arith.constant 0 : index
      %c0_14 = arith.constant 0 : index
      %16 = vector.load %arg6[%c0_13, %c0_14] : memref<34x32xf32, #tpu.memory_space<vmem>>, vector<34x32xf32>
      %17 = arith.addf %15, %16 : vector<34x32xf32>
      %cst_15 = arith.constant dense<0.000000e+00> : vector<34xf32>
      %18 = vector.multi_reduction <add>, %17, %cst_15 [1] : vector<34x32xf32> to vector<34xf32>
      %19 = vector.shape_cast %18 : vector<34xf32> to vector<34x1xf32>
      %cst_16 = arith.constant 3.200000e+01 : f32
      %20 = vector.broadcast %cst_16 : f32 to vector<34x1xf32>
      %21 = arith.divf %19, %20 : vector<34x1xf32>
      %22 = arith.mulf %17, %17 : vector<34x32xf32>
      %cst_17 = arith.constant dense<0.000000e+00> : vector<34xf32>
      %23 = vector.multi_reduction <add>, %22, %cst_17 [1] : vector<34x32xf32> to vector<34xf32>
      %24 = vector.shape_cast %23 : vector<34xf32> to vector<34x1xf32>
      %cst_18 = arith.constant 3.200000e+01 : f32
      %25 = vector.broadcast %cst_18 : f32 to vector<34x1xf32>
      %26 = arith.divf %24, %25 : vector<34x1xf32>
      %27 = arith.mulf %21, %21 : vector<34x1xf32>
      %28 = arith.subf %26, %27 : vector<34x1xf32>
      %29 = vector.broadcast %21 : vector<34x1xf32> to vector<34x32xf32>
      %30 = arith.subf %17, %29 : vector<34x32xf32>
      %cst_19 = arith.constant 9.99999974E-6 : f32
      %31 = vector.broadcast %cst_19 : f32 to vector<34x1xf32>
      %32 = arith.addf %28, %31 : vector<34x1xf32>
      %33 = math.rsqrt %32 : vector<34x1xf32>
      %34 = vector.broadcast %33 : vector<34x1xf32> to vector<34x32xf32>
      %35 = arith.mulf %30, %34 : vector<34x32xf32>
      %c0_20 = arith.constant 0 : index
      %c0_21 = arith.constant 0 : index
      %36 = vector.load %arg7[%c0_20, %c0_21] : memref<1x32xf32, #tpu.memory_space<vmem>>, vector<1x32xf32>
      %37 = vector.broadcast %36 : vector<1x32xf32> to vector<34x32xf32>
      %38 = arith.mulf %35, %37 : vector<34x32xf32>
      %c0_22 = arith.constant 0 : index
      %c0_23 = arith.constant 0 : index
      %39 = vector.load %arg8[%c0_22, %c0_23] : memref<1x32xf32, #tpu.memory_space<vmem>>, vector<1x32xf32>
      %40 = vector.broadcast %39 : vector<1x32xf32> to vector<34x32xf32>
      %41 = arith.addf %38, %40 : vector<34x32xf32>
      %c0_24 = arith.constant 0 : index
      %c0_25 = arith.constant 0 : index
      %c0_26 = arith.constant 0 : index
      %42 = vector.load %arg9[%c0_24, %c0_25, %c0_26] : memref<1x34x32xf32, #tpu.memory_space<vmem>>, vector<1x34x32xf32>
      %43 = vector.shape_cast %42 : vector<1x34x32xf32> to vector<34x32xf32>
      %44 = vector.shape_cast %41 : vector<34x32xf32> to vector<1x34x32xf32>
      tpu.vector_store %arg9[%c0_24, %c0_25, %c0_26], %44 {strides = array<i32>} : memref<1x34x32xf32, #tpu.memory_space<vmem>>, vector<1x34x32xf32>,
    } else {
    }
    return
  }
  func.func @transform_0(%arg0: i32, %arg1: i32, %arg2: i32, %arg3: i32) -> (i32, i32) {
    %c0_i32 = arith.constant 0 : i32
    return %arg1, %arg3 : i32, i32
  }
  func.func @transform_1(%arg0: i32, %arg1: i32, %arg2: i32, %arg3: i32) -> (i32, i32, i32) {
    %c0_i32 = arith.constant 0 : i32
    return %arg0, %arg3, %arg2 : i32, i32, i32
  }
  func.func @transform_2(%arg0: i32, %arg1: i32, %arg2: i32, %arg3: i32) -> (i32, i32) {
    %c0_i32 = arith.constant 0 : i32
    return %arg1, %arg2 : i32, i32
  }
  func.func @transform_3(%arg0: i32, %arg1: i32, %arg2: i32, %arg3: i32) -> (i32, i32) {
    %c0_i32 = arith.constant 0 : i32
    %c0_i32_0 = arith.constant 0 : i32
    %c0_i32_1 = arith.constant 0 : i32
    return %c0_i32, %c0_i32_0 : i32, i32
  }
  func.func @transform_4(%arg0: i32, %arg1: i32, %arg2: i32, %arg3: i32) -> (i32, i32) {
    %c0_i32 = arith.constant 0 : i32
    %c0_i32_0 = arith.constant 0 : i32
    %c0_i32_1 = arith.constant 0 : i32
    return %c0_i32, %c0_i32_0 : i32, i32
  }
  func.func @transform_5(%arg0: i32, %arg1: i32, %arg2: i32, %arg3: i32) -> (i32, i32, i32) {
    %c0_i32 = arith.constant 0 : i32
    return %arg0, %arg1, %arg2 : i32, i32, i32
  }
}

module attributes {stable_mosaic.version = 11 : i64} {
  func.func @_gemm_kernel(%arg0: i32, %arg1: i32, %arg2: i32, %arg3: i32, %arg4: memref<34x32xf32, #tpu.memory_space<vmem>>, %arg5: memref<1x32x64xf32, #tpu.memory_space<vmem>>, %arg6: memref<1x1x64xf32, #tpu.memory_space<vmem>>, %arg7: memref<1x34x64xf32, #tpu.memory_space<vmem>>, %arg8: memref<34x64xf32, #tpu.memory_space<vmem>>) attributes {dimension_semantics = [#tpu.dimension_semantics<parallel>, #tpu.dimension_semantics<parallel>, #tpu.dimension_semantics<parallel>, #tpu.dimension_semantics<arbitrary>], iteration_bounds = array<i64: 1, 1, 1, 1>, scalar_prefetch = 0 : i64, scratch_operands = 1 : i64, tpu.core_type = #tpu.core_type<tc>, window_params = [{transform_indices = @transform_0, window_bounds = array<i64: 34, 32>}, {transform_indices = @transform_1, window_bounds = array<i64: 1, 32, 64>}, {transform_indices = @transform_2, window_bounds = array<i64: 1, 1, 64>}, {transform_indices = @transform_3, window_bounds = array<i64: 1, 34, 64>}]} {
    %c0_i32 = arith.constant 0 : i32
    %0 = arith.cmpi eq, %arg3, %c0_i32 : i32
    %1 = arith.extui %0 : i1 to i32
    %c0_i32_0 = arith.constant 0 : i32
    %2 = arith.cmpi ne, %1, %c0_i32_0 : i32
    scf.if %2 {
      %cst_11 = arith.constant 0.000000e+00 : f32
      %15 = vector.broadcast %cst_11 : f32 to vector<34x64xf32>
      %c0_12 = arith.constant 0 : index
      %c0_13 = arith.constant 0 : index
      %16 = vector.load %arg8[%c0_12, %c0_13] : memref<34x64xf32, #tpu.memory_space<vmem>>, vector<34x64xf32>
      tpu.vector_store %arg8[%c0_12, %c0_13], %15 {strides = array<i32>} : memref<34x64xf32, #tpu.memory_space<vmem>>, vector<34x64xf32>,
    } else {
    }
    %c0 = arith.constant 0 : index
    %c0_1 = arith.constant 0 : index
    %3 = vector.load %arg8[%c0, %c0_1] : memref<34x64xf32, #tpu.memory_space<vmem>>, vector<34x64xf32>
    %c0_2 = arith.constant 0 : index
    %c0_3 = arith.constant 0 : index
    %4 = vector.load %arg4[%c0_2, %c0_3] : memref<34x32xf32, #tpu.memory_space<vmem>>, vector<34x32xf32>
    %5 = arith.truncf %4 : vector<34x32xf32> to vector<34x32xbf16>
    %c0_4 = arith.constant 0 : index
    %c0_5 = arith.constant 0 : index
    %c0_6 = arith.constant 0 : index
    %6 = vector.load %arg5[%c0_4, %c0_5, %c0_6] : memref<1x32x64xf32, #tpu.memory_space<vmem>>, vector<1x32x64xf32>
    %7 = vector.shape_cast %6 : vector<1x32x64xf32> to vector<32x64xf32>
    %8 = arith.truncf %7 : vector<32x64xf32> to vector<32x64xbf16>
    %cst = arith.constant dense<0.000000e+00> : vector<34x64xf32>
    %9 = tpu.matmul %5, %8, %cst {dimension_numbers = #tpu.dot_dimension_numbers<[1], [0], [0], [1], [0, 0, 1, 1], [], []>} : vector<34x32xbf16>, vector<32x64xbf16>, vector<34x64xf32> -> vector<34x64xf32>
    %10 = arith.addf %3, %9 : vector<34x64xf32>
    %c0_7 = arith.constant 0 : index
    %c0_8 = arith.constant 0 : index
    %11 = vector.load %arg8[%c0_7, %c0_8] : memref<34x64xf32, #tpu.memory_space<vmem>>, vector<34x64xf32>
    tpu.vector_store %arg8[%c0_7, %c0_8], %10 {strides = array<i32>} : memref<34x64xf32, #tpu.memory_space<vmem>>, vector<34x64xf32>,
    %c0_i32_9 = arith.constant 0 : i32
    %12 = arith.cmpi eq, %arg3, %c0_i32_9 : i32
    %13 = arith.extui %12 : i1 to i32
    %c0_i32_10 = arith.constant 0 : i32
    %14 = arith.cmpi ne, %13, %c0_i32_10 : i32
    scf.if %14 {
      %c0_11 = arith.constant 0 : index
      %c0_12 = arith.constant 0 : index
      %15 = vector.load %arg8[%c0_11, %c0_12] : memref<34x64xf32, #tpu.memory_space<vmem>>, vector<34x64xf32>
      %c0_13 = arith.constant 0 : index
      %c0_14 = arith.constant 0 : index
      %c0_15 = arith.constant 0 : index
      %16 = vector.load %arg6[%c0_13, %c0_14, %c0_15] : memref<1x1x64xf32, #tpu.memory_space<vmem>>, vector<1x1x64xf32>
      %17 = vector.shape_cast %16 : vector<1x1x64xf32> to vector<1x64xf32>
      %18 = vector.broadcast %17 : vector<1x64xf32> to vector<34x64xf32>
      %19 = arith.addf %15, %18 : vector<34x64xf32>
      %cst_16 = arith.constant 5.000000e-01 : f32
      %20 = vector.broadcast %cst_16 : f32 to vector<34x64xf32>
      %21 = arith.mulf %20, %19 : vector<34x64xf32>
      %cst_17 = arith.constant 0.707106769 : f32
      %22 = vector.broadcast %cst_17 : f32 to vector<34x64xf32>
      %23 = arith.mulf %19, %22 : vector<34x64xf32>
      %24 = math.erf %23 : vector<34x64xf32>
      %cst_18 = arith.constant 1.000000e+00 : f32
      %25 = vector.broadcast %cst_18 : f32 to vector<34x64xf32>
      %26 = arith.addf %25, %24 : vector<34x64xf32>
      %27 = arith.mulf %21, %26 : vector<34x64xf32>
      %c0_19 = arith.constant 0 : index
      %c0_20 = arith.constant 0 : index
      %c0_21 = arith.constant 0 : index
      %28 = vector.load %arg7[%c0_19, %c0_20, %c0_21] : memref<1x34x64xf32, #tpu.memory_space<vmem>>, vector<1x34x64xf32>
      %29 = vector.shape_cast %28 : vector<1x34x64xf32> to vector<34x64xf32>
      %30 = vector.shape_cast %27 : vector<34x64xf32> to vector<1x34x64xf32>
      tpu.vector_store %arg7[%c0_19, %c0_20, %c0_21], %30 {strides = array<i32>} : memref<1x34x64xf32, #tpu.memory_space<vmem>>, vector<1x34x64xf32>,
    } else {
    }
    return
  }
  func.func @transform_0(%arg0: i32, %arg1: i32, %arg2: i32, %arg3: i32) -> (i32, i32) {
    %c0_i32 = arith.constant 0 : i32
    return %arg1, %arg3 : i32, i32
  }
  func.func @transform_1(%arg0: i32, %arg1: i32, %arg2: i32, %arg3: i32) -> (i32, i32, i32) {
    %c0_i32 = arith.constant 0 : i32
    return %arg0, %arg3, %arg2 : i32, i32, i32
  }
  func.func @transform_2(%arg0: i32, %arg1: i32, %arg2: i32, %arg3: i32) -> (i32, i32, i32) {
    %c0_i32 = arith.constant 0 : i32
    %c0_i32_0 = arith.constant 0 : i32
    return %arg0, %c0_i32, %arg2 : i32, i32, i32
  }
  func.func @transform_3(%arg0: i32, %arg1: i32, %arg2: i32, %arg3: i32) -> (i32, i32, i32) {
    %c0_i32 = arith.constant 0 : i32
    return %arg0, %arg1, %arg2 : i32, i32, i32
  }
}

module attributes {stable_mosaic.version = 11 : i64} {
  func.func @_gemm_kernel(%arg0: i32, %arg1: i32, %arg2: i32, %arg3: i32, %arg4: memref<34x64xf32, #tpu.memory_space<vmem>>, %arg5: memref<1x64x32xf32, #tpu.memory_space<vmem>>, %arg6: memref<1x1x32xf32, #tpu.memory_space<vmem>>, %arg7: memref<34x32xf32, #tpu.memory_space<vmem>>, %arg8: memref<1x32xf32, #tpu.memory_space<vmem>>, %arg9: memref<1x32xf32, #tpu.memory_space<vmem>>, %arg10: memref<1x34x32xf32, #tpu.memory_space<vmem>>, %arg11: memref<34x32xf32, #tpu.memory_space<vmem>>) attributes {dimension_semantics = [#tpu.dimension_semantics<parallel>, #tpu.dimension_semantics<parallel>, #tpu.dimension_semantics<parallel>, #tpu.dimension_semantics<arbitrary>], iteration_bounds = array<i64: 1, 1, 1, 1>, scalar_prefetch = 0 : i64, scratch_operands = 1 : i64, tpu.core_type = #tpu.core_type<tc>, window_params = [{transform_indices = @transform_0, window_bounds = array<i64: 34, 64>}, {transform_indices = @transform_1, window_bounds = array<i64: 1, 64, 32>}, {transform_indices = @transform_2, window_bounds = array<i64: 1, 1, 32>}, {transform_indices = @transform_3, window_bounds = array<i64: 34, 32>}, {pipeline_mode = #tpu.pipeline_mode<synchronous>, transform_indices = @transform_4, window_bounds = array<i64: 1, 32>}, {pipeline_mode = #tpu.pipeline_mode<synchronous>, transform_indices = @transform_5, window_bounds = array<i64: 1, 32>}, {transform_indices = @transform_6, window_bounds = array<i64: 1, 34, 32>}]} {
    %c0_i32 = arith.constant 0 : i32
    %0 = arith.cmpi eq, %arg3, %c0_i32 : i32
    %1 = arith.extui %0 : i1 to i32
    %c0_i32_0 = arith.constant 0 : i32
    %2 = arith.cmpi ne, %1, %c0_i32_0 : i32
    scf.if %2 {
      %cst_11 = arith.constant 0.000000e+00 : f32
      %15 = vector.broadcast %cst_11 : f32 to vector<34x32xf32>
      %c0_12 = arith.constant 0 : index
      %c0_13 = arith.constant 0 : index
      %16 = vector.load %arg11[%c0_12, %c0_13] : memref<34x32xf32, #tpu.memory_space<vmem>>, vector<34x32xf32>
      tpu.vector_store %arg11[%c0_12, %c0_13], %15 {strides = array<i32>} : memref<34x32xf32, #tpu.memory_space<vmem>>, vector<34x32xf32>,
    } else {
    }
    %c0 = arith.constant 0 : index
    %c0_1 = arith.constant 0 : index
    %3 = vector.load %arg11[%c0, %c0_1] : memref<34x32xf32, #tpu.memory_space<vmem>>, vector<34x32xf32>
    %c0_2 = arith.constant 0 : index
    %c0_3 = arith.constant 0 : index
    %4 = vector.load %arg4[%c0_2, %c0_3] : memref<34x64xf32, #tpu.memory_space<vmem>>, vector<34x64xf32>
    %5 = arith.truncf %4 : vector<34x64xf32> to vector<34x64xbf16>
    %c0_4 = arith.constant 0 : index
    %c0_5 = arith.constant 0 : index
    %c0_6 = arith.constant 0 : index
    %6 = vector.load %arg5[%c0_4, %c0_5, %c0_6] : memref<1x64x32xf32, #tpu.memory_space<vmem>>, vector<1x64x32xf32>
    %7 = vector.shape_cast %6 : vector<1x64x32xf32> to vector<64x32xf32>
    %8 = arith.truncf %7 : vector<64x32xf32> to vector<64x32xbf16>
    %cst = arith.constant dense<0.000000e+00> : vector<34x32xf32>
    %9 = tpu.matmul %5, %8, %cst {dimension_numbers = #tpu.dot_dimension_numbers<[1], [0], [0], [1], [0, 0, 1, 1], [], []>} : vector<34x64xbf16>, vector<64x32xbf16>, vector<34x32xf32> -> vector<34x32xf32>
    %10 = arith.addf %3, %9 : vector<34x32xf32>
    %c0_7 = arith.constant 0 : index
    %c0_8 = arith.constant 0 : index
    %11 = vector.load %arg11[%c0_7, %c0_8] : memref<34x32xf32, #tpu.memory_space<vmem>>, vector<34x32xf32>
    tpu.vector_store %arg11[%c0_7, %c0_8], %10 {strides = array<i32>} : memref<34x32xf32, #tpu.memory_space<vmem>>, vector<34x32xf32>,
    %c0_i32_9 = arith.constant 0 : i32
    %12 = arith.cmpi eq, %arg3, %c0_i32_9 : i32
    %13 = arith.extui %12 : i1 to i32
    %c0_i32_10 = arith.constant 0 : i32
    %14 = arith.cmpi ne, %13, %c0_i32_10 : i32
    scf.if %14 {
      %c0_11 = arith.constant 0 : index
      %c0_12 = arith.constant 0 : index
      %15 = vector.load %arg11[%c0_11, %c0_12] : memref<34x32xf32, #tpu.memory_space<vmem>>, vector<34x32xf32>
      %c0_13 = arith.constant 0 : index
      %c0_14 = arith.constant 0 : index
      %c0_15 = arith.constant 0 : index
      %16 = vector.load %arg6[%c0_13, %c0_14, %c0_15] : memref<1x1x32xf32, #tpu.memory_space<vmem>>, vector<1x1x32xf32>
      %17 = vector.shape_cast %16 : vector<1x1x32xf32> to vector<1x32xf32>
      %18 = vector.broadcast %17 : vector<1x32xf32> to vector<34x32xf32>
      %19 = arith.addf %15, %18 : vector<34x32xf32>
      %c0_16 = arith.constant 0 : index
      %c0_17 = arith.constant 0 : index
      %20 = vector.load %arg7[%c0_16, %c0_17] : memref<34x32xf32, #tpu.memory_space<vmem>>, vector<34x32xf32>
      %21 = arith.addf %19, %20 : vector<34x32xf32>
      %cst_18 = arith.constant dense<0.000000e+00> : vector<34xf32>
      %22 = vector.multi_reduction <add>, %21, %cst_18 [1] : vector<34x32xf32> to vector<34xf32>
      %23 = vector.shape_cast %22 : vector<34xf32> to vector<34x1xf32>
      %cst_19 = arith.constant 3.200000e+01 : f32
      %24 = vector.broadcast %cst_19 : f32 to vector<34x1xf32>
      %25 = arith.divf %23, %24 : vector<34x1xf32>
      %26 = arith.mulf %21, %21 : vector<34x32xf32>
      %cst_20 = arith.constant dense<0.000000e+00> : vector<34xf32>
      %27 = vector.multi_reduction <add>, %26, %cst_20 [1] : vector<34x32xf32> to vector<34xf32>
      %28 = vector.shape_cast %27 : vector<34xf32> to vector<34x1xf32>
      %cst_21 = arith.constant 3.200000e+01 : f32
      %29 = vector.broadcast %cst_21 : f32 to vector<34x1xf32>
      %30 = arith.divf %28, %29 : vector<34x1xf32>
      %31 = arith.mulf %25, %25 : vector<34x1xf32>
      %32 = arith.subf %30, %31 : vector<34x1xf32>
      %33 = vector.broadcast %25 : vector<34x1xf32> to vector<34x32xf32>
      %34 = arith.subf %21, %33 : vector<34x32xf32>
      %cst_22 = arith.constant 9.99999974E-6 : f32
      %35 = vector.broadcast %cst_22 : f32 to vector<34x1xf32>
      %36 = arith.addf %32, %35 : vector<34x1xf32>
      %37 = math.rsqrt %36 : vector<34x1xf32>
      %38 = vector.broadcast %37 : vector<34x1xf32> to vector<34x32xf32>
      %39 = arith.mulf %34, %38 : vector<34x32xf32>
      %c0_23 = arith.constant 0 : index
      %c0_24 = arith.constant 0 : index
      %40 = vector.load %arg8[%c0_23, %c0_24] : memref<1x32xf32, #tpu.memory_space<vmem>>, vector<1x32xf32>
      %41 = vector.broadcast %40 : vector<1x32xf32> to vector<34x32xf32>
      %42 = arith.mulf %39, %41 : vector<34x32xf32>
      %c0_25 = arith.constant 0 : index
      %c0_26 = arith.constant 0 : index
      %43 = vector.load %arg9[%c0_25, %c0_26] : memref<1x32xf32, #tpu.memory_space<vmem>>, vector<1x32xf32>
      %44 = vector.broadcast %43 : vector<1x32xf32> to vector<34x32xf32>
      %45 = arith.addf %42, %44 : vector<34x32xf32>
      %c0_27 = arith.constant 0 : index
      %c0_28 = arith.constant 0 : index
      %c0_29 = arith.constant 0 : index
      %46 = vector.load %arg10[%c0_27, %c0_28, %c0_29] : memref<1x34x32xf32, #tpu.memory_space<vmem>>, vector<1x34x32xf32>
      %47 = vector.shape_cast %46 : vector<1x34x32xf32> to vector<34x32xf32>
      %48 = vector.shape_cast %45 : vector<34x32xf32> to vector<1x34x32xf32>
      tpu.vector_store %arg10[%c0_27, %c0_28, %c0_29], %48 {strides = array<i32>} : memref<1x34x32xf32, #tpu.memory_space<vmem>>, vector<1x34x32xf32>,
    } else {
    }
    return
  }
  func.func @transform_0(%arg0: i32, %arg1: i32, %arg2: i32, %arg3: i32) -> (i32, i32) {
    %c0_i32 = arith.constant 0 : i32
    return %arg1, %arg3 : i32, i32
  }
  func.func @transform_1(%arg0: i32, %arg1: i32, %arg2: i32, %arg3: i32) -> (i32, i32, i32) {
    %c0_i32 = arith.constant 0 : i32
    return %arg0, %arg3, %arg2 : i32, i32, i32
  }
  func.func @transform_2(%arg0: i32, %arg1: i32, %arg2: i32, %arg3: i32) -> (i32, i32, i32) {
    %c0_i32 = arith.constant 0 : i32
    %c0_i32_0 = arith.constant 0 : i32
    return %arg0, %c0_i32, %arg2 : i32, i32, i32
  }
  func.func @transform_3(%arg0: i32, %arg1: i32, %arg2: i32, %arg3: i32) -> (i32, i32) {
    %c0_i32 = arith.constant 0 : i32
    return %arg1, %arg2 : i32, i32
  }
  func.func @transform_4(%arg0: i32, %arg1: i32, %arg2: i32, %arg3: i32) -> (i32, i32) {
    %c0_i32 = arith.constant 0 : i32
    %c0_i32_0 = arith.constant 0 : i32
    %c0_i32_1 = arith.constant 0 : i32
    return %c0_i32, %c0_i32_0 : i32, i32
  }
  func.func @transform_5(%arg0: i32, %arg1: i32, %arg2: i32, %arg3: i32) -> (i32, i32) {
    %c0_i32 = arith.constant 0 : i32
    %c0_i32_0 = arith.constant 0 : i32
    %c0_i32_1 = arith.constant 0 : i32
    return %c0_i32, %c0_i32_0 : i32, i32
  }
  func.func @transform_6(%arg0: i32, %arg1: i32, %arg2: i32, %arg3: i32) -> (i32, i32, i32) {
    %c0_i32 = arith.constant 0 : i32
    return %arg0, %arg1, %arg2 : i32, i32, i32
  }
}

</mosaic_0001>

<llo_original>
// kernel: vit_forward.11
$region0: #{vit_forward.11}
  #allocation0 [shape = 'u32[]', space=smem, size = 0x4, offset = 0x4, fixed_abs, tag = 'smem constant byte address 0x4 - core index']
  #allocation1 [shape = 'u32[72,128]{1,0:T(1,128)}', space=vmem, size = 0x9000, scoped, tag = 'internal scratch']
  #allocation2 [shape = 'f32[32,32]{1,0:T(8,128)}', space=vmem, size = 0x4000, scoped, tag = 'scratch operand']
  %s0 = inlined_call_operand.vmem [shape: f32[32,64], index: 0, kind: input, shape index: {}]
  %s1 = inlined_call_operand.vmem [shape: f32[1,64,32], index: 1, kind: input, shape index: {}]
  %s2 = inlined_call_operand.vmem [shape: f32[1,1,32], index: 2, kind: input, shape index: {}]
  %s3 = inlined_call_operand.vmem [shape: f32[1,32,32], index: 3, kind: output, shape index: {}]
  %s4 = sld [smem:[#allocation0]]
  $region30: #{vit_forward.11} parent=0
    _
  %s6 = ssub.s32 1, %s4
  %s7 = scalar_select 0, %s6, %s4
  // Predicated region
  $region2: #{vit_forward.11} parent=0 // pred_check
    _
  $region3: #{vit_forward.11} parent=0 // pred_check_branch
    %9 = sbr.rel (0) target = $region5
  $region4: #{vit_forward.11} parent=0 // pred_region
    _
  $region5: #{vit_forward.11} parent=0 // pred_fallthru
    _
  // Predicated region
  $region6: #{vit_forward.11} parent=0 // pred_check
    _
  $region7: #{vit_forward.11} parent=0 // pred_check_branch
    %11 = sbr.rel (0) target = $region9
  $region8: #{vit_forward.11} parent=0 // pred_region
    _
  $region9: #{vit_forward.11} parent=0 // pred_fallthru
    _
  // Predicated region
  $region10: #{vit_forward.11} parent=0 // pred_check
    _
  $region11: #{vit_forward.11} parent=0 // pred_check_branch
    %13 = sbr.rel (0) target = $region13
  $region12: #{vit_forward.11} parent=0 // pred_region
    _
  $region13: #{vit_forward.11} parent=0 // pred_fallthru
    _
  %p15 = scmp.eq.s32.totalorder 0, 0
  // Predicated region
  $region14: #{vit_forward.11} parent=0 // pred_check
    %p16 = pneg %p15
  $region15: #{vit_forward.11} parent=0 // pred_check_branch
    %18 = sbr.rel (%p16) target = $region17
  $region16: #{vit_forward.11} parent=0 // pred_region
    %vm19 = vcmask 261120
    %20 = vst.msk [vmem:[#allocation2] sm:$0xff] %vm19, 0.0
    %21 = vst.msk [vmem:[#allocation2 + $0x8] sm:$0xff] %vm19, 0.0
    %22 = vst.msk [vmem:[#allocation2 + $0x10] sm:$0xff] %vm19, 0.0
    %23 = vst.msk [vmem:[#allocation2 + $0x18] sm:$0xff] %vm19, 0.0
  $region17: #{vit_forward.11} parent=0 // pred_fallthru
    _
  %v24 = vld [vmem:[#allocation2] sm:$0xff]
  %v25 = vld [vmem:[#allocation2 + $0x8] sm:$0xff]
  %v26 = vld [vmem:[#allocation2 + $0x10] sm:$0xff]
  %v27 = vld [vmem:[#allocation2 + $0x18] sm:$0xff]
  %v28 = vld [vmem:[%s0] sm:$0xff]
  %v29 = vld [vmem:[%s0 + $0x8] sm:$0xff]
  %v30 = vld [vmem:[%s0 + $0x10] sm:$0xff]
  %v31 = vld [vmem:[%s0 + $0x18] sm:$0xff]
  %v32 = vpack.c.bf16 %v29, %v28
  %v33 = vpack.c.bf16 %v31, %v30
  %v34 = vld [vmem:[%s1] sm:$0xff]
  %v35 = vld [vmem:[%s1 + $0x8] sm:$0xff]
  %v36 = vld [vmem:[%s1 + $0x10] sm:$0xff]
  %v37 = vld [vmem:[%s1 + $0x18] sm:$0xff]
  %v38 = vld [vmem:[%s1 + $0x20] sm:$0xff]
  %v39 = vld [vmem:[%s1 + $0x28] sm:$0xff]
  %v40 = vld [vmem:[%s1 + $0x30] sm:$0xff]
  %v41 = vld [vmem:[%s1 + $0x38] sm:$0xff]
  %v42 = vpack.c.bf16 %v35, %v34
  %v43 = vpack.c.bf16 %v37, %v36
  %v44 = vpack.c.bf16 %v39, %v38
  %v45 = vpack.c.bf16 %v41, %v40
  %vm46 = vcmask 523264
  %v48 = vsel %vm46, %v32, 0
  %v51 = vsel %vm46, %v33, 0
  %53 = vmatpush.bf16.msra.mxu0 0
  %54 = vmatpush.bf16.msra.mxu0 0
  %55 = vmatpush.bf16.msra.mxu0 0
  %56 = vmatpush.bf16.msra.mxu0 0
  %57 = vmatpush.bf16.msra.mxu0 %v45
  %58 = vmatpush.bf16.msra.mxu0 %v44
  %59 = vmatpush.bf16.msra.mxu0 %v43
  %60 = vmatpush.bf16.msra.mxu0 %v42
  %61 = vmatmul.bf16.gmra.mxu0 %v48
  %v62 = vpop.f32.mrf.mxu0
  %v63 = vadd.f32 0.0, %v62
  %v64 = vpop.f32.mrf.mxu0
  %v65 = vadd.f32 0.0, %v64
  %66 = vmatmul.bf16.gmra.mxu0 %v51
  %v67 = vpop.f32.mrf.mxu0
  %v68 = vadd.f32 0.0, %v67
  %v69 = vpop.f32.mrf.mxu0
  %v70 = vadd.f32 0.0, %v69
  %71 = vdwg.mxu0
  %v72 = vadd.f32 %v24, %v63
  %v73 = vadd.f32 %v25, %v65
  %v74 = vadd.f32 %v26, %v68
  %v75 = vadd.f32 %v27, %v70
  %vm76 = vcmask 261120
  %77 = vst.msk [vmem:[#allocation2] sm:$0xff] %vm76, %v72
  %78 = vst.msk [vmem:[#allocation2 + $0x8] sm:$0xff] %vm76, %v73
  %79 = vst.msk [vmem:[#allocation2 + $0x10] sm:$0xff] %vm76, %v74
  %80 = vst.msk [vmem:[#allocation2 + $0x18] sm:$0xff] %vm76, %v75
  // Predicated region
  $region18: #{vit_forward.11} parent=0 // pred_check
    %p81 = pneg %p15
  $region19: #{vit_forward.11} parent=0 // pred_check_branch
    %83 = sbr.rel (%p81) target = $region21
  $region20: #{vit_forward.11} parent=0 // pred_region
    %v84 = vld [vmem:[#allocation2] sm:$0xff]
    %v85 = vld [vmem:[#allocation2 + $0x8] sm:$0xff]
    %v86 = vld [vmem:[#allocation2 + $0x10] sm:$0xff]
    %v87 = vld [vmem:[#allocation2 + $0x18] sm:$0xff]
    %v88 = vld [vmem:[%s2] sm:$0x1]
    %v90 = vperm.slane %v88, 0
    %v92 = vadd.f32 %v84, %v90
    %v93 = vadd.f32 %v85, %v90
    %v94 = vadd.f32 %v86, %v90
    %v95 = vadd.f32 %v87, %v90
    %96 = vst.msk [vmem:[%s3] sm:$0xff] %vm76, %v92
    %97 = vst.msk [vmem:[%s3 + $0x8] sm:$0xff] %vm76, %v93
    %98 = vst.msk [vmem:[%s3 + $0x10] sm:$0xff] %vm76, %v94
    %99 = vst.msk [vmem:[%s3 + $0x18] sm:$0xff] %vm76, %v95
  $region21: #{vit_forward.11} parent=0 // pred_fallthru
    _
  // Predicated region
  $region22: #{vit_forward.11} parent=0 // pred_check
    _
  $region23: #{vit_forward.11} parent=0 // pred_check_branch
    %101 = sbr.rel (0) target = $region25
  $region24: #{vit_forward.11} parent=0 // pred_region
    _
  $region25: #{vit_forward.11} parent=0 // pred_fallthru
    _
  // Predicated region
  $region26: #{vit_forward.11} parent=0 // pred_check
    _
  $region27: #{vit_forward.11} parent=0 // pred_check_branch
    %103 = sbr.rel (0) target = $region29
  $region28: #{vit_forward.11} parent=0 // pred_region
    _
  $region29: #{vit_forward.11} parent=0 // pred_fallthru
    _

// kernel: vit_forward.12
$region0: #{vit_forward.12}
  #allocation0 [shape = 'u32[]', space=smem, size = 0x4, offset = 0x4, fixed_abs, tag = 'smem constant byte address 0x4 - core index']
  #allocation1 [shape = 'u32[72,128]{1,0:T(1,128)}', space=vmem, size = 0x9000, scoped, tag = 'internal scratch']
  #allocation2 [shape = 'f32[34,32]{1,0:T(8,128)}', space=vmem, size = 0x5000, scoped, tag = 'scratch operand']
  %s0 = inlined_call_operand.vmem [shape: f32[34,32], index: 0, kind: input, shape index: {}]
  %s1 = inlined_call_operand.vmem [shape: f32[3,32,32], index: 1, kind: input, shape index: {}]
  %s2 = inlined_call_operand.vmem [shape: f32[3,34,32], index: 2, kind: output, shape index: {}]
  %s3 = sld [smem:[#allocation0]]
  $region49: #{vit_forward.12} parent=0
    _
  %s5 = ssub.s32 1, %s3
  %s6 = scalar_select 0, %s5, %s3
  loop: start=0, step=1, limit=5
  $region2: #{vit_forward.12} parent=0 // loop_pre_header
    _
  $region3: #{vit_forward.12} parent=0 // loop_header
    %s8 = sphi 0, %s12
    %p9 = scmp.ge.s32.totalorder %s8, 5
    %s15 = sphi 0, %s41
    %s16 = sphi 0, %s37
    %s17 = sphi 0, %s33
    %s18 = sphi 0, %s29
    %s19 = sphi 0, %s15
    %s20 = sphi 0, %s16
    %s21 = sphi 0, %s17
    %s22 = sphi 0, %s18
    %s23 = sphi 0, %s19
    %s24 = sphi 0, %s20
    %s25 = sphi 0, %s21
    %s26 = sphi 0, %s22
    %s46 = sphi 0, %s48
    %s49 = sphi 0, %s46
    %s50 = sphi 0, %s49
    %s66 = sphi 0, %s50
    %s76 = sphi 0, %s78
    %s79 = sphi 0, %s76
    %s80 = sphi 0, %s79
    %s96 = sphi 0, %s80
    %s106 = sphi 0, %s108
    %s109 = sphi 0, %s106
    %s110 = sphi 0, %s109
    %s126 = sphi 0, %s110
  $region4: #{vit_forward.12} parent=0 // loop_header_branch
    %11 = sbr.rel (%p9) target = $region8
  $region5: #{vit_forward.12} parent=0 // loop_body
    %s13 = ssub.s32 %s8, 1
    %s14 = ssub.s32 %s8, 2
    %s27 = sadd.s32 1, %s18
    %p28 = scmp.ge.s32.totalorder %s27, 1
    %s29 = scalar_select %p28, 0, %s27
    %s30 = sadd.s32 1, %s17
    %s31 = scalar_select %p28, %s30, %s17
    %p32 = scmp.ge.s32.totalorder %s31, 1
    %s33 = scalar_select %p32, 0, %s31
    %s34 = sadd.s32 1, %s16
    %s35 = scalar_select %p32, %s34, %s16
    %p36 = scmp.ge.s32.totalorder %s35, 1
    %s37 = scalar_select %p36, 0, %s35
    %s38 = sadd.s32 1, %s15
    %s39 = scalar_select %p36, %s38, %s15
    %p40 = scmp.ge.s32.totalorder %s39, 3
    %s41 = scalar_select %p40, 0, %s39
    %s42 = ssub.s32 %s16, %s37
    %s43 = ssub.s32 %s18, %s29
    %s44 = sor.u32 %s42, %s43
    %p45 = scmp.eq.s32.totalorder %s44, 0
    %s47 = sadd.s32 %s46, 1
    %s48 = scalar_select %p45, %s46, %s47
    %p51 = pneg %p45
    %p52 = scmp.eq.s32.totalorder %s8, 2
    %p53 = por %p51, %p52
    %p54 = scmp.ne.s32.totalorder %s46, %s49
    %p55 = scmp.eq.s32.totalorder %s8, 0
    %p56 = por %p54, %p55
    %p57 = scmp.ne.s32.totalorder %s46, %s49
    %p58 = scmp.eq.s32.totalorder %s13, 2
    %p59 = por %p57, %p58
    %p60 = scmp.ne.s32.totalorder %s49, %s50
    %p61 = scmp.eq.s32.totalorder %s13, 0
    %p62 = por %p60, %p61
    %p63 = scmp.ne.s32.totalorder %s49, %s50
    %p64 = scmp.eq.s32.totalorder %s14, 2
    %p65 = por %p63, %p64
    %p67 = scmp.ne.s32.totalorder %s50, %s66
    %p68 = scmp.eq.s32.totalorder %s14, 0
    %p69 = por %p67, %p68
    %s70 = ssub.s32 %s15, %s41
    %s71 = ssub.s32 %s18, %s29
    %s72 = sor.u32 %s70, %s71
    %s73 = ssub.s32 %s17, %s33
    %s74 = sor.u32 %s72, %s73
    %p75 = scmp.eq.s32.totalorder %s74, 0
    %s77 = sadd.s32 %s76, 1
    %s78 = scalar_select %p75, %s76, %s77
    %p81 = pneg %p75
    %p82 = scmp.eq.s32.totalorder %s8, 2
    %p83 = por %p81, %p82
    %p84 = scmp.ne.s32.totalorder %s76, %s79
    %p85 = scmp.eq.s32.totalorder %s8, 0
    %p86 = por %p84, %p85
    %p87 = scmp.ne.s32.totalorder %s76, %s79
    %p88 = scmp.eq.s32.totalorder %s13, 2
    %p89 = por %p87, %p88
    %p90 = scmp.ne.s32.totalorder %s79, %s80
    %p91 = scmp.eq.s32.totalorder %s13, 0
    %p92 = por %p90, %p91
    %p93 = scmp.ne.s32.totalorder %s79, %s80
    %p94 = scmp.eq.s32.totalorder %s14, 2
    %p95 = por %p93, %p94
    %p97 = scmp.ne.s32.totalorder %s80, %s96
    %p98 = scmp.eq.s32.totalorder %s14, 0
    %p99 = por %p97, %p98
    %s100 = ssub.s32 %s15, %s41
    %s101 = ssub.s32 %s16, %s37
    %s102 = sor.u32 %s100, %s101
    %s103 = ssub.s32 %s17, %s33
    %s104 = sor.u32 %s102, %s103
    %p105 = scmp.eq.s32.totalorder %s104, 0
    %s107 = sadd.s32 %s106, 1
    %s108 = scalar_select %p105, %s106, %s107
    %p111 = pneg %p105
    %p112 = scmp.eq.s32.totalorder %s8, 2
    %p113 = por %p111, %p112
    %p114 = scmp.ne.s32.totalorder %s106, %s109
    %p115 = scmp.eq.s32.totalorder %s8, 0
    %p116 = por %p114, %p115
    %p117 = scmp.ne.s32.totalorder %s106, %s109
    %p118 = scmp.eq.s32.totalorder %s13, 2
    %p119 = por %p117, %p118
    %p120 = scmp.ne.s32.totalorder %s109, %s110
    %p121 = scmp.eq.s32.totalorder %s13, 0
    %p122 = por %p120, %p121
    %p123 = scmp.ne.s32.totalorder %s109, %s110
    %p124 = scmp.eq.s32.totalorder %s14, 2
    %p125 = por %p123, %p124
    %p127 = scmp.ne.s32.totalorder %s110, %s126
    %p128 = scmp.eq.s32.totalorder %s14, 0
    %p129 = por %p127, %p128
    %p130 = scmp.le.s32.totalorder 1, %s8
    %p131 = scmp.lt.s32.totalorder %s8, 4
    %p132 = pnand %p130, %p131
    %p133 = pneg %p132
    // Predicated region
    $region9: #{vit_forward.12} parent=5 // pred_check
      _
    $region10: #{vit_forward.12} parent=5 // pred_check_branch
      %135 = sbr.rel (%p132) target = $region12
    $region11: #{vit_forward.12} parent=5 // pred_region
      %s136 = ssub.s32 %s8, 1
      // Predicated region
      $region13: #{vit_forward.12} parent=11 // pred_check
        %p137 = pneg %p62
      $region14: #{vit_forward.12} parent=11 // pred_check_branch
        %139 = sbr.rel (%p137) target = $region16
      $region15: #{vit_forward.12} parent=11 // pred_region
        %s140 = smul.u32 5, %s20
        %p141 = scmp.lt.s32.totalorder %s140, 4
        %s142 = scalar_select %p141, %s140, 4
        %p143 = scmp.lt.s32.totalorder %s22, 0
        %s144 = scalar_select %p143, %s22, 0
        %s145 = sadd.s32 %s144, %s142
        %s146 = smul.addr %s145, 8
        %s147 = scalar_lea.vmem %s0, %s146
        %s148 = smul.u32 5, %s20
      $region16: #{vit_forward.12} parent=11 // pred_fallthru
        _
    $region12: #{vit_forward.12} parent=5 // pred_fallthru
      _
    %p149 = scmp.lt.s32.totalorder %s8, 3
    // Predicated region
    $region17: #{vit_forward.12} parent=5 // pred_check
      %p150 = pneg %p149
    $region18: #{vit_forward.12} parent=5 // pred_check_branch
      %152 = sbr.rel (%p150) target = $region20
    $region19: #{vit_forward.12} parent=5 // pred_region
      // Predicated region
      $region21: #{vit_forward.12} parent=19 // pred_check
        %p153 = pneg %p86
      $region22: #{vit_forward.12} parent=19 // pred_check_branch
        %155 = sbr.rel (%p153) target = $region24
      $region23: #{vit_forward.12} parent=19 // pred_region
        %s156 = smul.u32 4, %s18
        %p157 = scmp.lt.s32.totalorder %s15, 2
        %s158 = scalar_select %p157, %s15, 2
        %p159 = scmp.lt.s32.totalorder %s156, 3
        %s160 = scalar_select %p159, %s156, 3
        %p161 = scmp.lt.s32.totalorder %s17, 0
        %s162 = scalar_select %p161, %s17, 0
        %s163 = sadd.s32 %s162, %s160
        %s164 = smul.addr %s158, 4
        %s165 = sadd.s32 %s163, %s164
        %s166 = smul.addr %s165, 8
        %s167 = scalar_lea.vmem %s1, %s166
        %s168 = smul.u32 4, %s18
      $region24: #{vit_forward.12} parent=19 // pred_fallthru
        _
    $region20: #{vit_forward.12} parent=5 // pred_fallthru
      _
    %p169 = scmp.le.s32.totalorder 1, %s8
    %p170 = scmp.lt.s32.totalorder %s8, 4
    %p171 = pnand %p169, %p170
    %p172 = pneg %p171
    // Predicated region
    $region25: #{vit_forward.12} parent=5 // pred_check
      _
    $region26: #{vit_forward.12} parent=5 // pred_check_branch
      %174 = sbr.rel (%p171) target = $region28
    $region27: #{vit_forward.12} parent=5 // pred_region
      %s175 = ssub.s32 %s8, 1
      %s176 = smul.u32 5, %s20
      %p177 = scmp.lt.s32.totalorder %s176, 4
      %s178 = scalar_select %p177, %s176, 4
      %p179 = scmp.lt.s32.totalorder %s22, 0
      %s180 = scalar_select %p179, %s22, 0
      %s181 = sadd.s32 %s180, %s178
      %s182 = smul.addr %s181, 8
      %s183 = scalar_lea.vmem %s0, %s182
      %p184 = pneg %p62
      %p185 = pneg %p59
      %s186 = smul.u32 4, %s22
      %p187 = scmp.lt.s32.totalorder %s19, 2
      %s188 = scalar_select %p187, %s19, 2
      %p189 = scmp.lt.s32.totalorder %s186, 3
      %s190 = scalar_select %p189, %s186, 3
      %p191 = scmp.lt.s32.totalorder %s21, 0
      %s192 = scalar_select %p191, %s21, 0
      %s193 = sadd.s32 %s192, %s190
      %s194 = smul.addr %s188, 4
      %s195 = sadd.s32 %s193, %s194
      %s196 = smul.addr %s195, 8
      %s197 = scalar_lea.vmem %s1, %s196
      %p198 = pneg %p92
      %p199 = pneg %p89
      %p200 = pneg %p122
      %p201 = pneg %p119
      %s202 = smul.u32 5, %s20
      %p203 = scmp.lt.s32.totalorder %s19, 2
      %s204 = scalar_select %p203, %s19, 2
      %p205 = scmp.lt.s32.totalorder %s202, 4
      %s206 = scalar_select %p205, %s202, 4
      %p207 = scmp.lt.s32.totalorder %s21, 0
      %s208 = scalar_select %p207, %s21, 0
      %s209 = sadd.s32 %s208, %s206
      %s210 = smul.addr %s204, 5
      %s211 = sadd.s32 %s209, %s210
      %s212 = smul.addr %s211, 8
      %s213 = scalar_lea.vmem %s2, %s212
      %s214 = smul.u32 5, %s20
      %p215 = scmp.lt.s32.totalorder %s214, 4
      %s216 = scalar_select %p215, %s214, 4
      %p217 = scmp.lt.s32.totalorder %s22, 0
      %s218 = scalar_select %p217, %s22, 0
      %s219 = sadd.s32 %s218, %s216
      %s220 = smul.addr %s219, 8
      %s221 = scalar_lea.vmem %s0, %s220
      %s222 = smul.u32 5, %s20
      %s223 = smul.u32 4, %s22
      %p224 = scmp.lt.s32.totalorder %s19, 2
      %s225 = scalar_select %p224, %s19, 2
      %p226 = scmp.lt.s32.totalorder %s223, 3
      %s227 = scalar_select %p226, %s223, 3
      %p228 = scmp.lt.s32.totalorder %s21, 0
      %s229 = scalar_select %p228, %s21, 0
      %s230 = sadd.s32 %s229, %s227
      %s231 = smul.addr %s225, 4
      %s232 = sadd.s32 %s230, %s231
      %s233 = smul.addr %s232, 8
      %s234 = scalar_lea.vmem %s1, %s233
      %s235 = smul.u32 4, %s22
      %s236 = smul.u32 5, %s20
      %p237 = scmp.lt.s32.totalorder %s19, 2
      %s238 = scalar_select %p237, %s19, 2
      %p239 = scmp.lt.s32.totalorder %s236, 4
      %s240 = scalar_select %p239, %s236, 4
      %p241 = scmp.lt.s32.totalorder %s21, 0
      %s242 = scalar_select %p241, %s21, 0
      %s243 = sadd.s32 %s242, %s240
      %s244 = smul.addr %s238, 5
      %s245 = sadd.s32 %s243, %s244
      %s246 = smul.addr %s245, 8
      %s247 = scalar_lea.vmem %s2, %s246
      %s248 = smul.u32 5, %s20
      %p250 = scmp.eq.s32.totalorder %s22, 0
      // Predicated region
      $region29: #{vit_forward.12} parent=27 // pred_check
        %p251 = pneg %p250
      $region30: #{vit_forward.12} parent=27 // pred_check_branch
        %253 = sbr.rel (%p251) target = $region32
      $region31: #{vit_forward.12} parent=27 // pred_region
        %vm254 = vcmask 261120
        %255 = vst.msk [vmem:[#allocation2] sm:$0xff] %vm254, 0.0
        %256 = vst.msk [vmem:[#allocation2 + $0x8] sm:$0xff] %vm254, 0.0
        %257 = vst.msk [vmem:[#allocation2 + $0x10] sm:$0xff] %vm254, 0.0
        %258 = vst.msk [vmem:[#allocation2 + $0x18] sm:$0xff] %vm254, 0.0
        %vm259 = vcmask 254976
        %260 = vst.msk [vmem:[#allocation2 + $0x20] sm:$0x3] %vm259, 0.0
      $region32: #{vit_forward.12} parent=27 // pred_fallthru
        _
      %v261 = vld [vmem:[#allocation2] sm:$0xff]
      %v262 = vld [vmem:[#allocation2 + $0x8] sm:$0xff]
      %v263 = vld [vmem:[#allocation2 + $0x10] sm:$0xff]
      %v264 = vld [vmem:[#allocation2 + $0x18] sm:$0xff]
      %v265 = vld [vmem:[#allocation2 + $0x20] sm:$0x3]
      %v266 = vld [vmem:[%s221] sm:$0xff]
      %v267 = vld [vmem:[%s221 + $0x8] sm:$0xff]
      %v268 = vld [vmem:[%s221 + $0x10] sm:$0xff]
      %v269 = vld [vmem:[%s221 + $0x18] sm:$0xff]
      %v270 = vld [vmem:[%s221 + $0x20] sm:$0x3]
      %v271 = vpack.c.bf16 %v267, %v266
      %v272 = vpack.c.bf16 %v269, %v268
      %v273 = vpack.c.bf16 %v270, %v270
      %v274 = vld [vmem:[%s234] sm:$0xff]
      %v275 = vld [vmem:[%s234 + $0x8] sm:$0xff]
      %v276 = vld [vmem:[%s234 + $0x10] sm:$0xff]
      %v277 = vld [vmem:[%s234 + $0x18] sm:$0xff]
      %v278 = vpack.c.bf16 %v275, %v274
      %v279 = vpack.c.bf16 %v277, %v276
      %vm280 = vcmask 261120
      %v282 = vsel %vm280, %v271, 0
      %v285 = vsel %vm280, %v272, 0
      %v288 = vsel %vm280, %v273, 0
      %290 = vmatpush.bf16.msra.mxu0 0
      %291 = vmatpush.bf16.msra.mxu0 0
      %292 = vmatpush.bf16.msra.mxu0 0
      %293 = vmatpush.bf16.msra.mxu0 0
      %294 = vmatpush.bf16.msra.mxu0 0
      %295 = vmatpush.bf16.msra.mxu0 0
      %296 = vmatpush.bf16.msra.mxu0 %v279
      %297 = vmatpush.bf16.msra.mxu0 %v278
      %298 = vmatmul.bf16.gmra.mxu0 %v282
      %v299 = vpop.f32.mrf.mxu0
      %v300 = vadd.f32 0.0, %v299
      %v301 = vpop.f32.mrf.mxu0
      %v302 = vadd.f32 0.0, %v301
      %303 = vmatmul.bf16.gmra.mxu0 %v285
      %v304 = vpop.f32.mrf.mxu0
      %v305 = vadd.f32 0.0, %v304
      %v306 = vpop.f32.mrf.mxu0
      %v307 = vadd.f32 0.0, %v306
      %308 = vmatmul.bf16.gmra.mxu0 %v288
      %v309 = vpop.f32.mrf.mxu0
      %v310 = vadd.f32 0.0, %v309
      %v311 = vpop.f32.mrf.mxu0
      %312 = vdwg.mxu0
      %v313 = vadd.f32 %v261, %v300
      %v314 = vadd.f32 %v262, %v302
      %v315 = vadd.f32 %v263, %v305
      %v316 = vadd.f32 %v264, %v307
      %v317 = vadd.f32 %v265, %v310
      %318 = vst.msk [vmem:[#allocation2] sm:$0xff] %vm280, %v313
      %319 = vst.msk [vmem:[#allocation2 + $0x8] sm:$0xff] %vm280, %v314
      %320 = vst.msk [vmem:[#allocation2 + $0x10] sm:$0xff] %vm280, %v315
      %321 = vst.msk [vmem:[#allocation2 + $0x18] sm:$0xff] %vm280, %v316
      %vm322 = vcmask 254976
      %323 = vst.msk [vmem:[#allocation2 + $0x20] sm:$0x3] %vm322, %v317
      // Predicated region
      $region33: #{vit_forward.12} parent=27 // pred_check
        %p324 = pneg %p250
      $region34: #{vit_forward.12} parent=27 // pred_check_branch
        %326 = sbr.rel (%p324) target = $region36
      $region35: #{vit_forward.12} parent=27 // pred_region
        %v327 = vld [vmem:[#allocation2] sm:$0xff]
        %v328 = vld [vmem:[#allocation2 + $0x8] sm:$0xff]
        %v329 = vld [vmem:[#allocation2 + $0x10] sm:$0xff]
        %v330 = vld [vmem:[#allocation2 + $0x18] sm:$0xff]
        %v331 = vld [vmem:[#allocation2 + $0x20] sm:$0x3]
        %332 = vst.msk [vmem:[%s247] sm:$0xff] %vm280, %v327
        %333 = vst.msk [vmem:[%s247 + $0x8] sm:$0xff] %vm280, %v328
        %334 = vst.msk [vmem:[%s247 + $0x10] sm:$0xff] %vm280, %v329
        %335 = vst.msk [vmem:[%s247 + $0x18] sm:$0xff] %vm280, %v330
        %336 = vst.msk [vmem:[%s247 + $0x20] sm:$0x3] %vm322, %v331
      $region36: #{vit_forward.12} parent=27 // pred_fallthru
        _
      %s337 = smul.u32 5, %s20
      %p338 = scmp.lt.s32.totalorder %s19, 2
      %s339 = scalar_select %p338, %s19, 2
      %p340 = scmp.lt.s32.totalorder %s337, 4
      %s341 = scalar_select %p340, %s337, 4
      %p342 = scmp.lt.s32.totalorder %s21, 0
      %s343 = scalar_select %p342, %s21, 0
      %s344 = sadd.s32 %s343, %s341
      %s345 = smul.addr %s339, 5
      %s346 = sadd.s32 %s344, %s345
      %s347 = smul.addr %s346, 8
      %s348 = scalar_lea.vmem %s2, %s347
      // Predicated region
      $region37: #{vit_forward.12} parent=27 // pred_check
        %p349 = pneg %p119
      $region38: #{vit_forward.12} parent=27 // pred_check_branch
        %351 = sbr.rel (%p349) target = $region40
      $region39: #{vit_forward.12} parent=27 // pred_region
        %s352 = smul.u32 5, %s20
      $region40: #{vit_forward.12} parent=27 // pred_fallthru
        _
    $region28: #{vit_forward.12} parent=5 // pred_fallthru
      _
    %p353 = scmp.le.s32.totalorder 2, %s8
    // Predicated region
    $region41: #{vit_forward.12} parent=5 // pred_check
      %p354 = pneg %p353
    $region42: #{vit_forward.12} parent=5 // pred_check_branch
      %356 = sbr.rel (%p354) target = $region44
    $region43: #{vit_forward.12} parent=5 // pred_region
      %s357 = ssub.s32 %s8, 2
      // Predicated region
      $region45: #{vit_forward.12} parent=43 // pred_check
        %p358 = pneg %p125
      $region46: #{vit_forward.12} parent=43 // pred_check_branch
        %360 = sbr.rel (%p358) target = $region48
      $region47: #{vit_forward.12} parent=43 // pred_region
        %s361 = smul.u32 5, %s24
        %p362 = scmp.lt.s32.totalorder %s23, 2
        %s363 = scalar_select %p362, %s23, 2
        %p364 = scmp.lt.s32.totalorder %s361, 4
        %s365 = scalar_select %p364, %s361, 4
        %p366 = scmp.lt.s32.totalorder %s25, 0
        %s367 = scalar_select %p366, %s25, 0
        %s368 = sadd.s32 %s367, %s365
        %s369 = smul.addr %s363, 5
        %s370 = sadd.s32 %s368, %s369
        %s371 = smul.addr %s370, 8
        %s372 = scalar_lea.vmem %s2, %s371
      $region48: #{vit_forward.12} parent=43 // pred_fallthru
        _
    $region44: #{vit_forward.12} parent=5 // pred_fallthru
      _
  $region6: #{vit_forward.12} parent=0 // loop_footer
    %s12 = sadd.s32 1, %s8
  $region7: #{vit_forward.12} parent=0 // loop_footer_branch
    %7 = sbr.rel target = $region3
  $region8: #{vit_forward.12} parent=0 // loop_exit
    _

// kernel: vit_forward.13
$region0: #{vit_forward.13}
  #allocation0 [shape = 'u32[]', space=smem, size = 0x4, offset = 0x4, fixed_abs, tag = 'smem constant byte address 0x4 - core index']
  #allocation1 [shape = 'u32[72,128]{1,0:T(1,128)}', space=vmem, size = 0x9000, scoped, tag = 'internal scratch']
  %s0 = inlined_call_operand.vmem [shape: f32[3,2,17,32], index: 0, kind: input, shape index: {}]
  %s1 = inlined_call_operand.vmem [shape: f32[2,17,32], index: 1, kind: output, shape index: {}]
  %s2 = sld [smem:[#allocation0]]
  $region75: #{vit_forward.13} parent=0
    _
  %s4 = ssub.s32 1, %s2
  %s5 = scalar_select 0, %s4, %s2
  $region1: #{vit_forward.13} parent=0
    #allocation2 [shape = 'u8[73728]{0}', space=vmem, size = 0x12000, scoped, tag = 'input window, operand 0']
    loop: start=0, step=1, limit=4
    $region2: #{vit_forward.13} parent=1 // loop_pre_header
      _
    $region3: #{vit_forward.13} parent=1 // loop_header
      %s7 = sphi 0, %s11
      %p8 = scmp.ge.s32.totalorder %s7, 4
      %s17 = sphi 0, %s19
      %s20 = sphi 0, %s17
      %s21 = sphi 0, %s20
      %s37 = sphi 0, %s21
      %s43 = sphi 0, %s45
      %s46 = sphi 0, %s43
      %s47 = sphi 0, %s46
      %s63 = sphi 0, %s47
    $region4: #{vit_forward.13} parent=1 // loop_header_branch
      %10 = sbr.rel (%p8) target = $region8
    $region5: #{vit_forward.13} parent=1 // loop_body
      %s12 = ssub.s32 %s7, 1
      %s13 = ssub.s32 %s7, 2
      %s14 = sadd.s32 %s7, 1
      %s15 = ssub.s32 %s7, %s14
      %p16 = scmp.eq.s32.totalorder %s15, 0
      %s18 = sadd.s32 %s17, 1
      %s19 = scalar_select %p16, %s17, %s18
      %p22 = pneg %p16
      %p23 = scmp.eq.s32.totalorder %s7, 1
      %p24 = por %p22, %p23
      %p25 = scmp.ne.s32.totalorder %s17, %s20
      %p26 = scmp.eq.s32.totalorder %s7, 0
      %p27 = por %p25, %p26
      %p28 = scmp.ne.s32.totalorder %s17, %s20
      %p29 = scmp.eq.s32.totalorder %s12, 1
      %p30 = por %p28, %p29
      %p31 = scmp.ne.s32.totalorder %s20, %s21
      %p32 = scmp.eq.s32.totalorder %s12, 0
      %p33 = por %p31, %p32
      %p34 = scmp.ne.s32.totalorder %s20, %s21
      %p35 = scmp.eq.s32.totalorder %s13, 1
      %p36 = por %p34, %p35
      %p38 = scmp.ne.s32.totalorder %s21, %s37
      %p39 = scmp.eq.s32.totalorder %s13, 0
      %p40 = por %p38, %p39
      %s41 = ssub.s32 %s7, %s14
      %p42 = scmp.eq.s32.totalorder %s41, 0
      %s44 = sadd.s32 %s43, 1
      %s45 = scalar_select %p42, %s43, %s44
      %p48 = pneg %p42
      %p49 = scmp.eq.s32.totalorder %s7, 1
      %p50 = por %p48, %p49
      %p51 = scmp.ne.s32.totalorder %s43, %s46
      %p52 = scmp.eq.s32.totalorder %s7, 0
      %p53 = por %p51, %p52
      %p54 = scmp.ne.s32.totalorder %s43, %s46
      %p55 = scmp.eq.s32.totalorder %s12, 1
      %p56 = por %p54, %p55
      %p57 = scmp.ne.s32.totalorder %s46, %s47
      %p58 = scmp.eq.s32.totalorder %s12, 0
      %p59 = por %p57, %p58
      %p60 = scmp.ne.s32.totalorder %s46, %s47
      %p61 = scmp.eq.s32.totalorder %s13, 1
      %p62 = por %p60, %p61
      %p64 = scmp.ne.s32.totalorder %s47, %s63
      %p65 = scmp.eq.s32.totalorder %s13, 0
      %p66 = por %p64, %p65
      %p67 = scmp.le.s32.totalorder 1, %s7
      %p68 = scmp.lt.s32.totalorder %s7, 3
      %p69 = pnand %p67, %p68
      %p70 = pneg %p69
      // Predicated region
      $region9: #{vit_forward.13} parent=5 // pred_check
        _
      $region10: #{vit_forward.13} parent=5 // pred_check_branch
        %72 = sbr.rel (%p69) target = $region12
      $region11: #{vit_forward.13} parent=5 // pred_region
        %s73 = ssub.s32 %s7, 1
      $region12: #{vit_forward.13} parent=5 // pred_fallthru
        _
      %p74 = scmp.lt.s32.totalorder %s7, 2
      // Predicated region
      $region13: #{vit_forward.13} parent=5 // pred_check
        %p75 = pneg %p74
      $region14: #{vit_forward.13} parent=5 // pred_check_branch
        %77 = sbr.rel (%p75) target = $region16
      $region15: #{vit_forward.13} parent=5 // pred_region
        // Predicated region
        $region17: #{vit_forward.13} parent=15 // pred_check
          %p78 = pneg %p27
        $region18: #{vit_forward.13} parent=15 // pred_check_branch
          %80 = sbr.rel (%p78) target = $region20
        $region19: #{vit_forward.13} parent=15 // pred_region
          %s81 = sand.u32 %s17, 1
          %s82 = sand.u32 %s17, 1
          %s83 = smul.addr %s82, 72
          %s84 = scalar_lea.vmem [#allocation2], %s83
          %s85 = smul.addr %s7, 3
          %s86 = smul.addr %s85, 8
          %s87 = scalar_lea.vmem %s0, %s86
          // Predicated region
          $region21: #{vit_forward.13} parent=19 // pred_check
            _
          $region22: #{vit_forward.13} parent=19 // pred_check_branch
            %89 = sbr.rel (0) target = $region24
          $region23: #{vit_forward.13} parent=19 // pred_region
            // Predicated region
            $region25: #{vit_forward.13} parent=23 // pred_check
              _
            $region26: #{vit_forward.13} parent=23 // pred_check_branch
              %91 = sbr.rel (0) target = $region28
            $region27: #{vit_forward.13} parent=23 // pred_region
              // Predicated region
              $region40: #{vit_forward.13} parent=27 // pred_check
                _
              $region41: #{vit_forward.13} parent=27 // pred_check_branch
                %123 = sbr.rel (0) target = $region43
              $region42: #{vit_forward.13} parent=27 // pred_region
                loop: start=0, step=1, limit=1
                $region44: #{vit_forward.13} parent=42 // loop_pre_header
                  _
                $region45: #{vit_forward.13} parent=42 // loop_header
                  %s125 = sphi 0, %s129
                  %p126 = scmp.ge.s32.totalorder %s125, 1
                  %s130 = sphi %s87, %s87
                  %s131 = sphi %s84, %s84
                $region46: #{vit_forward.13} parent=42 // loop_header_branch
                  %128 = sbr.rel (%p126) target = $region50
                $region47: #{vit_forward.13} parent=42 // loop_body
                  %v132 = vld [vmem:[%s130] sm:$0xff]
                  %133 = vst [vmem:[%s131] sm:$0xff] %v132
                  %v134 = vld [vmem:[%s130 + $0x8] sm:$0xff]
                  %135 = vst [vmem:[%s131 + $0x8] sm:$0xff] %v134
                  %v136 = vld [vmem:[%s130 + $0x10] sm:$0xff]
                  %137 = vst [vmem:[%s131 + $0x10] sm:$0xff] %v136
                  %v138 = vld [vmem:[%s130 + $0x30] sm:$0xff]
                  %139 = vst [vmem:[%s131 + $0x18] sm:$0xff] %v138
                  %v140 = vld [vmem:[%s130 + $0x38] sm:$0xff]
                  %141 = vst [vmem:[%s131 + $0x20] sm:$0xff] %v140
                  %v142 = vld [vmem:[%s130 + $0x40] sm:$0xff]
                  %143 = vst [vmem:[%s131 + $0x28] sm:$0xff] %v142
                  %v144 = vld [vmem:[%s130 + $0x60] sm:$0xff]
                  %145 = vst [vmem:[%s131 + $0x30] sm:$0xff] %v144
                  %v146 = vld [vmem:[%s130 + $0x68] sm:$0xff]
                  %147 = vst [vmem:[%s131 + $0x38] sm:$0xff] %v146
                  %v148 = vld [vmem:[%s130 + $0x70] sm:$0xff]
                  %149 = vst [vmem:[%s131 + $0x40] sm:$0xff] %v148
                $region48: #{vit_forward.13} parent=42 // loop_footer
                  %s129 = sadd.s32 1, %s125
                $region49: #{vit_forward.13} parent=42 // loop_footer_branch
                  %124 = sbr.rel target = $region45
                $region50: #{vit_forward.13} parent=42 // loop_exit
                  _
              $region43: #{vit_forward.13} parent=27 // pred_fallthru
                _
              // Predicated region
              $region51: #{vit_forward.13} parent=27 // pred_check
                _
              $region52: #{vit_forward.13} parent=27 // pred_check_branch
                %151 = sbr.rel target = $region54
              $region53: #{vit_forward.13} parent=27 // pred_region
                _
              $region54: #{vit_forward.13} parent=27 // pred_fallthru
                _
            $region28: #{vit_forward.13} parent=23 // pred_fallthru
              _
            // Predicated region
            $region29: #{vit_forward.13} parent=23 // pred_check
              _
            $region30: #{vit_forward.13} parent=23 // pred_check_branch
              %93 = sbr.rel target = $region32
            $region31: #{vit_forward.13} parent=23 // pred_region
              %s95 = ssub.s32 256, 1
              loop: start=0, step=1, limit=1
              $region33: #{vit_forward.13} parent=31 // loop_pre_header
                _
              $region34: #{vit_forward.13} parent=31 // loop_header
                %s97 = sphi 0, %s101
                %p98 = scmp.ge.s32.totalorder %s97, 1
                %s102 = sphi %s87, %s87
                %s103 = sphi %s84, %s84
              $region35: #{vit_forward.13} parent=31 // loop_header_branch
                %100 = sbr.rel (%p98) target = $region39
              $region36: #{vit_forward.13} parent=31 // loop_body
                %v104 = vld [vmem:[%s102] sm:%s95]
                %105 = vst [vmem:[%s103] sm:%s95] %v104
                %v106 = vld [vmem:[%s102 + $0x8] sm:%s95]
                %107 = vst [vmem:[%s103 + $0x8] sm:%s95] %v106
                %v108 = vld [vmem:[%s102 + $0x10] sm:%s95]
                %109 = vst [vmem:[%s103 + $0x10] sm:%s95] %v108
                %v110 = vld [vmem:[%s102 + $0x30] sm:%s95]
                %111 = vst [vmem:[%s103 + $0x18] sm:%s95] %v110
                %v112 = vld [vmem:[%s102 + $0x38] sm:%s95]
                %113 = vst [vmem:[%s103 + $0x20] sm:%s95] %v112
                %v114 = vld [vmem:[%s102 + $0x40] sm:%s95]
                %115 = vst [vmem:[%s103 + $0x28] sm:%s95] %v114
                %v116 = vld [vmem:[%s102 + $0x60] sm:%s95]
                %117 = vst [vmem:[%s103 + $0x30] sm:%s95] %v116
                %v118 = vld [vmem:[%s102 + $0x68] sm:%s95]
                %119 = vst [vmem:[%s103 + $0x38] sm:%s95] %v118
                %v120 = vld [vmem:[%s102 + $0x70] sm:%s95]
                %121 = vst [vmem:[%s103 + $0x40] sm:%s95] %v120
              $region37: #{vit_forward.13} parent=31 // loop_footer
                %s101 = sadd.s32 1, %s97
              $region38: #{vit_forward.13} parent=31 // loop_footer_branch
                %96 = sbr.rel target = $region34
              $region39: #{vit_forward.13} parent=31 // loop_exit
                _
            $region32: #{vit_forward.13} parent=23 // pred_fallthru
              _
          $region24: #{vit_forward.13} parent=19 // pred_fallthru
            _
          %152 = vnop
        $region20: #{vit_forward.13} parent=15 // pred_fallthru
          _
      $region16: #{vit_forward.13} parent=5 // pred_fallthru
        _
      %p153 = scmp.le.s32.totalorder 1, %s7
      %p154 = scmp.lt.s32.totalorder %s7, 3
      %p155 = pnand %p153, %p154
      %p156 = pneg %p155
      // Predicated region
      $region55: #{vit_forward.13} parent=5 // pred_check
        _
      $region56: #{vit_forward.13} parent=5 // pred_check_branch
        %158 = sbr.rel (%p155) target = $region58
      $region57: #{vit_forward.13} parent=5 // pred_region
        %s159 = ssub.s32 %s7, 1
        %s160 = sand.u32 %s20, 1
        %s161 = sand.u32 %s20, 1
        %s162 = smul.addr %s161, 72
        %s163 = scalar_lea.vmem [#allocation2], %s162
        // Predicated region
        $region59: #{vit_forward.13} parent=57 // pred_check
          %p164 = pneg %p33
        $region60: #{vit_forward.13} parent=57 // pred_check_branch
          %166 = sbr.rel (%p164) target = $region62
        $region61: #{vit_forward.13} parent=57 // pred_region
          _
        $region62: #{vit_forward.13} parent=57 // pred_fallthru
          _
        %s167 = sand.u32 %s20, 1
        %s168 = sand.u32 %s20, 1
        %s169 = smul.addr %s168, 72
        %s170 = scalar_lea.vmem [#allocation2], %s169
        %p171 = pneg %p33
        %p172 = pneg %p30
        %p173 = pneg %p59
        %p174 = pneg %p56
        %p175 = scmp.lt.s32.totalorder %s12, 1
        %s176 = scalar_select %p175, %s12, 1
        %s177 = smul.addr %s176, 3
        %s178 = smul.addr %s177, 8
        %s179 = scalar_lea.vmem %s1, %s178
        %p180 = scmp.lt.s32.totalorder %s12, 1
        %s181 = scalar_select %p180, %s12, 1
        %s182 = smul.addr %s181, 3
        %s183 = smul.addr %s182, 8
        %s184 = scalar_lea.vmem %s1, %s183
        %v186 = vld [vmem:[%s163] sm:$0xff]
        %v187 = vld [vmem:[%s163 + $0x8] sm:$0xff]
        %v188 = vld [vmem:[%s163 + $0x10] sm:$0x1]
        %s189 = scalar_lea.vmem %s163, 24 [#allocation2]
        %v190 = vld [vmem:[%s189] sm:$0xff]
        %v191 = vld [vmem:[%s189 + $0x8] sm:$0xff]
        %v192 = vld [vmem:[%s189 + $0x10] sm:$0x1]
        %s193 = scalar_lea.vmem %s163, 48 [#allocation2]
        %v194 = vld [vmem:[%s193] sm:$0xff]
        %v195 = vld [vmem:[%s193 + $0x8] sm:$0xff]
        %v196 = vld [vmem:[%s193 + $0x10] sm:$0x1]
        %v197 = vpack.c.bf16 %v187, %v186
        %v198 = vpack.c.bf16 %v188, %v188
        %v199 = vpack.c.bf16 %v191, %v190
        %v200 = vpack.c.bf16 %v192, %v192
        %v201 = vpack.c.bf16 %v195, %v194
        %v202 = vpack.c.bf16 %v196, %v196
        %vm203 = vcmask 130048
        %v205 = vsel %vm203, %v197, 0
        %v208 = vsel %vm203, %v198, 0
        %v211 = vsel %vm203, %v199, 0
        %v214 = vsel %vm203, %v200, 0
        %216 = vmatpush.bf16.xpose.msra.mxu0 0
        %217 = vmatpush.bf16.xpose.msra.mxu0 0
        %218 = vmatpush.bf16.xpose.msra.mxu0 0
        %219 = vmatpush.bf16.xpose.msra.mxu0 0
        %220 = vmatpush.bf16.xpose.msra.mxu0 0
        %221 = vmatpush.bf16.xpose.msra.mxu0 0
        %222 = vmatpush.bf16.xpose.msra.mxu0 %v214
        %223 = vmatpush.bf16.xpose.msra.mxu0 %v211
        %224 = vmatmul.bf16.gmra.mxu0 %v205
        %v225 = vpop.f32.mrf.mxu0
        %v226 = vadd.f32 0.0, %v225
        %v227 = vpop.f32.mrf.mxu0
        %v228 = vadd.f32 0.0, %v227
        %229 = vmatmul.bf16.gmra.mxu0 %v208
        %v230 = vpop.f32.mrf.mxu0
        %v231 = vadd.f32 0.0, %v230
        %v232 = vpop.f32.mrf.mxu0
        %233 = vdwg.mxu0
        %v234 = vmul.f32 %v226, 8.0
        %v235 = vmul.f32 %v228, 8.0
        %v236 = vmul.f32 %v231, 8.0
        %vm237 = vcmask 138240
        %v238 = vsel %vm237, %v234, -inf
        %239 = vmax.xlane.f32.xlu0 %v238
        %v240 = vpop.xlane.xlu0 %239
        %v241 = vsel %vm237, %v235, -inf
        %242 = vmax.xlane.f32.xlu0 %v241
        %v243 = vpop.xlane.xlu0 %242
        %vm244 = vcmask 131072
        %v245 = vsel %vm244, %v236, -inf
        %246 = vmax.xlane.f32.xlu0 %v245
        %v247 = vpop.xlane.xlu0 %246
        %v248 = vsub.f32 %v234, %v240
        %v249 = vsub.f32 %v235, %v243
        %v250 = vsub.f32 %v236, %v247
        %v251 = vmul.f32 %v248, 1.442695
        %v252 = vpow.pop %v251
        %v253 = vmul.f32 %v249, 1.442695
        %v254 = vpow.pop %v253
        %v255 = vmul.f32 %v250, 1.442695
        %v256 = vpow.pop %v255
        %v257 = vsel %vm237, %v252, 0.0
        %258 = vadd.xlane.f32.xlu0 %v257
        %v259 = vpop.xlane.xlu0 %258
        %v260 = vsel %vm237, %v254, 0.0
        %261 = vadd.xlane.f32.xlu0 %v260
        %v262 = vpop.xlane.xlu0 %261
        %v263 = vsel %vm244, %v256, 0.0
        %264 = vadd.xlane.f32.xlu0 %v263
        %v265 = vpop.xlane.xlu0 %264
        %v266 = vrcp.pop %v259
        %v267 = vmul.f32 %v259, %v266
        %v268 = vsub.f32 1.0, %v267
        %v269 = vmul.f32 %v266, %v268
        %v270 = vadd.f32 %v266, %v269
        %vm271 = vweird.f32 %v259
        %vm272 = vweird.f32 %v266
        %vm273 = vmor %vm271, %vm272
        %v274 = vsel %vm273, %v266, %v270
        %v275 = vand.u32 2147483647, %v259
        %vm276 = vcmp.eq.f32.partialorder %v275, 8.507059e+37
        %v277 = vand.u32 %v259, 2147483648
        %v278 = vor.u32 1.1754944e-38, %v277
        %v279 = vsel %vm276, %v278, %v274
        %v280 = vmul.f32 %v252, %v279
        %v281 = vrcp.pop %v262
        %v282 = vmul.f32 %v262, %v281
        %v283 = vsub.f32 1.0, %v282
        %v284 = vmul.f32 %v281, %v283
        %v285 = vadd.f32 %v281, %v284
        %vm286 = vweird.f32 %v262
        %vm287 = vweird.f32 %v281
        %vm288 = vmor %vm286, %vm287
        %v289 = vsel %vm288, %v281, %v285
        %v290 = vand.u32 2147483647, %v262
        %vm291 = vcmp.eq.f32.partialorder %v290, 8.507059e+37
        %v292 = vand.u32 %v262, 2147483648
        %v293 = vor.u32 1.1754944e-38, %v292
        %v294 = vsel %vm291, %v293, %v289
        %v295 = vmul.f32 %v254, %v294
        %v296 = vrcp.pop %v265
        %v297 = vmul.f32 %v265, %v296
        %v298 = vsub.f32 1.0, %v297
        %v299 = vmul.f32 %v296, %v298
        %v300 = vadd.f32 %v296, %v299
        %vm301 = vweird.f32 %v265
        %vm302 = vweird.f32 %v296
        %vm303 = vmor %vm301, %vm302
        %v304 = vsel %vm303, %v296, %v300
        %v305 = vand.u32 2147483647, %v265
        %vm306 = vcmp.eq.f32.partialorder %v305, 8.507059e+37
        %v307 = vand.u32 %v265, 2147483648
        %v308 = vor.u32 1.1754944e-38, %v307
        %v309 = vsel %vm306, %v308, %v304
        %v310 = vmul.f32 %v256, %v309
        %v311 = vpack.c.bf16 %v295, %v280
        %v312 = vpack.c.bf16 %v310, %v310
        %v314 = vsel %vm237, %v311, 0
        %v317 = vsel %vm237, %v312, 0
        %vm319 = vcmask 1040384
        %v320 = vsel 0, 4294967295, 65535
        %v321 = vsel %vm319, %v320, 0
        %v323 = vand.u32 %v202, %v321
        %325 = vmatpush.bf16.msra.mxu0 0
        %326 = vmatpush.bf16.msra.mxu0 0
        %327 = vmatpush.bf16.msra.mxu0 0
        %328 = vmatpush.bf16.msra.mxu0 0
        %329 = vmatpush.bf16.msra.mxu0 0
        %330 = vmatpush.bf16.msra.mxu0 0
        %331 = vmatpush.bf16.msra.mxu0 %v323
        %332 = vmatpush.bf16.msra.mxu0 %v201
        %333 = vmatmul.bf16.gmra.mxu0 %v314
        %v334 = vpop.f32.mrf.mxu0
        %v335 = vadd.f32 0.0, %v334
        %v336 = vpop.f32.mrf.mxu0
        %v337 = vadd.f32 0.0, %v336
        %338 = vmatmul.bf16.gmra.mxu0 %v317
        %v339 = vpop.f32.mrf.mxu0
        %v340 = vadd.f32 0.0, %v339
        %v341 = vpop.f32.mrf.mxu0
        %342 = vdwg.mxu0
        %343 = vst.msk [vmem:[%s184] sm:$0xff] %vm203, %v335
        %344 = vst.msk [vmem:[%s184 + $0x8] sm:$0xff] %vm203, %v337
        %vm345 = vcmask 122880
        %346 = vst.msk [vmem:[%s184 + $0x10] sm:$0x1] %vm345, %v340
        %349 = vrot.lane.b32.xlu0 %v197, 112
        %v350 = vpop.permute.xlu0 %349
        %351 = vrot.lane.b32.xlu0 %v198, 112
        %v352 = vpop.permute.xlu0 %351
        %355 = vrot.lane.b32.xlu0 %v199, 112
        %v356 = vpop.permute.xlu0 %355
        %357 = vrot.lane.b32.xlu0 %v200, 112
        %v358 = vpop.permute.xlu0 %357
        %v360 = vsel %vm203, %v350, 0
        %v363 = vsel %vm203, %v352, 0
        %v366 = vsel %vm203, %v356, 0
        %v369 = vsel %vm203, %v358, 0
        %371 = vmatpush.bf16.xpose.msra.mxu0 0
        %372 = vmatpush.bf16.xpose.msra.mxu0 0
        %373 = vmatpush.bf16.xpose.msra.mxu0 0
        %374 = vmatpush.bf16.xpose.msra.mxu0 0
        %375 = vmatpush.bf16.xpose.msra.mxu0 0
        %376 = vmatpush.bf16.xpose.msra.mxu0 0
        %377 = vmatpush.bf16.xpose.msra.mxu0 %v369
        %378 = vmatpush.bf16.xpose.msra.mxu0 %v366
        %379 = vmatmul.bf16.gmra.mxu0 %v360
        %v380 = vpop.f32.mrf.mxu0
        %v381 = vadd.f32 0.0, %v380
        %v382 = vpop.f32.mrf.mxu0
        %v383 = vadd.f32 0.0, %v382
        %384 = vmatmul.bf16.gmra.mxu0 %v363
        %v385 = vpop.f32.mrf.mxu0
        %v386 = vadd.f32 0.0, %v385
        %v387 = vpop.f32.mrf.mxu0
        %388 = vdwg.mxu0
        %v389 = vmul.f32 %v381, 8.0
        %v390 = vmul.f32 %v383, 8.0
        %v391 = vmul.f32 %v386, 8.0
        %v392 = vsel %vm237, %v389, -inf
        %393 = vmax.xlane.f32.xlu0 %v392
        %v394 = vpop.xlane.xlu0 %393
        %v395 = vsel %vm237, %v390, -inf
        %396 = vmax.xlane.f32.xlu0 %v395
        %v397 = vpop.xlane.xlu0 %396
        %v398 = vsel %vm244, %v391, -inf
        %399 = vmax.xlane.f32.xlu0 %v398
        %v400 = vpop.xlane.xlu0 %399
        %v401 = vsub.f32 %v389, %v394
        %v402 = vsub.f32 %v390, %v397
        %v403 = vsub.f32 %v391, %v400
        %v404 = vmul.f32 %v401, 1.442695
        %v405 = vpow.pop %v404
        %v406 = vmul.f32 %v402, 1.442695
        %v407 = vpow.pop %v406
        %v408 = vmul.f32 %v403, 1.442695
        %v409 = vpow.pop %v408
        %v410 = vsel %vm237, %v405, 0.0
        %411 = vadd.xlane.f32.xlu0 %v410
        %v412 = vpop.xlane.xlu0 %411
        %v413 = vsel %vm237, %v407, 0.0
        %414 = vadd.xlane.f32.xlu0 %v413
        %v415 = vpop.xlane.xlu0 %414
        %v416 = vsel %vm244, %v409, 0.0
        %417 = vadd.xlane.f32.xlu0 %v416
        %v418 = vpop.xlane.xlu0 %417
        %v419 = vrcp.pop %v412
        %v420 = vmul.f32 %v412, %v419
        %v421 = vsub.f32 1.0, %v420
        %v422 = vmul.f32 %v419, %v421
        %v423 = vadd.f32 %v419, %v422
        %vm424 = vweird.f32 %v412
        %vm425 = vweird.f32 %v419
        %vm426 = vmor %vm424, %vm425
        %v427 = vsel %vm426, %v419, %v423
        %v428 = vand.u32 2147483647, %v412
        %vm429 = vcmp.eq.f32.partialorder %v428, 8.507059e+37
        %v430 = vand.u32 %v412, 2147483648
        %v431 = vor.u32 1.1754944e-38, %v430
        %v432 = vsel %vm429, %v431, %v427
        %v433 = vmul.f32 %v405, %v432
        %v434 = vrcp.pop %v415
        %v435 = vmul.f32 %v415, %v434
        %v436 = vsub.f32 1.0, %v435
        %v437 = vmul.f32 %v434, %v436
        %v438 = vadd.f32 %v434, %v437
        %vm439 = vweird.f32 %v415
        %vm440 = vweird.f32 %v434
        %vm441 = vmor %vm439, %vm440
        %v442 = vsel %vm441, %v434, %v438
        %v443 = vand.u32 2147483647, %v415
        %vm444 = vcmp.eq.f32.partialorder %v443, 8.507059e+37
        %v445 = vand.u32 %v415, 2147483648
        %v446 = vor.u32 1.1754944e-38, %v445
        %v447 = vsel %vm444, %v446, %v442
        %v448 = vmul.f32 %v407, %v447
        %v449 = vrcp.pop %v418
        %v450 = vmul.f32 %v418, %v449
        %v451 = vsub.f32 1.0, %v450
        %v452 = vmul.f32 %v449, %v451
        %v453 = vadd.f32 %v449, %v452
        %vm454 = vweird.f32 %v418
        %vm455 = vweird.f32 %v449
        %vm456 = vmor %vm454, %vm455
        %v457 = vsel %vm456, %v449, %v453
        %v458 = vand.u32 2147483647, %v418
        %vm459 = vcmp.eq.f32.partialorder %v458, 8.507059e+37
        %v460 = vand.u32 %v418, 2147483648
        %v461 = vor.u32 1.1754944e-38, %v460
        %v462 = vsel %vm459, %v461, %v457
        %v463 = vmul.f32 %v409, %v462
        %v464 = vpack.c.bf16 %v448, %v433
        %v465 = vpack.c.bf16 %v463, %v463
        %468 = vrot.lane.b32.xlu0 %v201, 112
        %v469 = vpop.permute.xlu0 %468
        %470 = vrot.lane.b32.xlu0 %v202, 112
        %v471 = vpop.permute.xlu0 %470
        %v474 = vsel %vm237, %v464, 0
        %v477 = vsel %vm237, %v465, 0
        %v480 = vand.u32 %v471, %v321
        %482 = vmatpush.bf16.msra.mxu0 0
        %483 = vmatpush.bf16.msra.mxu0 0
        %484 = vmatpush.bf16.msra.mxu0 0
        %485 = vmatpush.bf16.msra.mxu0 0
        %486 = vmatpush.bf16.msra.mxu0 0
        %487 = vmatpush.bf16.msra.mxu0 0
        %488 = vmatpush.bf16.msra.mxu0 %v480
        %489 = vmatpush.bf16.msra.mxu0 %v469
        %490 = vmatmul.bf16.gmra.mxu0 %v474
        %v491 = vpop.f32.mrf.mxu0
        %v492 = vadd.f32 0.0, %v491
        %v493 = vpop.f32.mrf.mxu0
        %v494 = vadd.f32 0.0, %v493
        %495 = vmatmul.bf16.gmra.mxu0 %v477
        %v496 = vpop.f32.mrf.mxu0
        %v497 = vadd.f32 0.0, %v496
        %v498 = vpop.f32.mrf.mxu0
        %499 = vdwg.mxu0
        %503 = vrot.lane.b32.xlu0 %v492, 16
        %v504 = vpop.permute.xlu0 %503
        %505 = vrot.lane.b32.xlu0 %v494, 16
        %v506 = vpop.permute.xlu0 %505
        %507 = vrot.lane.b32.xlu0 %v497, 16
        %v508 = vpop.permute.xlu0 %507
        %vm512 = vcmask 261248
        %513 = vst.msk [vmem:[%s184] sm:$0xff] %vm512, %v504
        %514 = vst.msk [vmem:[%s184 + $0x8] sm:$0xff] %vm512, %v506
        %vm515 = vcmask 254080
        %516 = vst.msk [vmem:[%s184 + $0x10] sm:$0x1] %vm515, %v508
        %p517 = scmp.lt.s32.totalorder %s12, 1
        %s518 = scalar_select %p517, %s12, 1
        %s519 = smul.addr %s518, 3
        %s520 = smul.addr %s519, 8
        %s521 = scalar_lea.vmem %s1, %s520
        // Predicated region
        $region63: #{vit_forward.13} parent=57 // pred_check
          %p522 = pneg %p56
        $region64: #{vit_forward.13} parent=57 // pred_check_branch
          %524 = sbr.rel (%p522) target = $region66
        $region65: #{vit_forward.13} parent=57 // pred_region
          _
        $region66: #{vit_forward.13} parent=57 // pred_fallthru
          _
      $region58: #{vit_forward.13} parent=5 // pred_fallthru
        _
      %p525 = scmp.le.s32.totalorder 2, %s7
      // Predicated region
      $region67: #{vit_forward.13} parent=5 // pred_check
        %p526 = pneg %p525
      $region68: #{vit_forward.13} parent=5 // pred_check_branch
        %528 = sbr.rel (%p526) target = $region70
      $region69: #{vit_forward.13} parent=5 // pred_region
        %s529 = ssub.s32 %s7, 2
        // Predicated region
        $region71: #{vit_forward.13} parent=69 // pred_check
          %p530 = pneg %p62
        $region72: #{vit_forward.13} parent=69 // pred_check_branch
          %532 = sbr.rel (%p530) target = $region74
        $region73: #{vit_forward.13} parent=69 // pred_region
          %p533 = scmp.lt.s32.totalorder %s13, 1
          %s534 = scalar_select %p533, %s13, 1
          %s535 = smul.addr %s534, 3
          %s536 = smul.addr %s535, 8
          %s537 = scalar_lea.vmem %s1, %s536
        $region74: #{vit_forward.13} parent=69 // pred_fallthru
          _
      $region70: #{vit_forward.13} parent=5 // pred_fallthru
        _
    $region6: #{vit_forward.13} parent=1 // loop_footer
      %s11 = sadd.s32 1, %s7
    $region7: #{vit_forward.13} parent=1 // loop_footer_branch
      %6 = sbr.rel target = $region3
    $region8: #{vit_forward.13} parent=1 // loop_exit
      _

// kernel: squeeze.13
$region0: #{squeeze.13}
  %s0 = inlined_call_operand.vmem [shape: f32[1,34,32], index: 0, kind: input, shape index: {}]
  %s1 = inlined_call_operand.vmem [shape: f32[2,17,32], index: 1, kind: output, shape index: {}]
  %v2 = vld [vmem:[%s0] sm:$0xff]
  %vm3 = vcmask 261120
  %4 = vst.msk [vmem:[%s1] sm:$0xff] %vm3, %v2
  %s5 = scalar_lea.vmem %s0, 8
  %v6 = vld [vmem:[%s5] sm:$0xff]
  %vm7 = vcmask 261120
  %s8 = scalar_lea.vmem %s1, 8
  %9 = vst.msk [vmem:[%s8] sm:$0xff] %vm7, %v6
  %s10 = scalar_lea.vmem %s0, 16
  %v11 = vld [vmem:[%s10] sm:$0xff]
  %vm12 = vcmask 261120
  %s13 = scalar_lea.vmem %s1, 16
  %14 = vst.msk [vmem:[%s13] ss:$8 sm:$0x3] %vm12, %v11
  %s15 = scalar_lea.vmem %s1, 23
  %16 = vst.msk [vmem:[%s15] sm:$0xfc] %vm12, %v11
  %s17 = scalar_lea.vmem %s0, 24
  %v18 = vld [vmem:[%s17] sm:$0xff]
  %vm19 = vcmask 261120
  %s20 = scalar_lea.vmem %s1, 31
  %21 = vst.msk [vmem:[%s20] sm:$0xff] %vm19, %v18
  %s22 = scalar_lea.vmem %s0, 32
  %v23 = vld [vmem:[%s22] sm:$0x3]
  %vm24 = vcmask 261120
  %s25 = scalar_lea.vmem %s1, 39
  %26 = vst.msk [vmem:[%s25] sm:$0x3] %vm24, %v23

// kernel: vit_forward.14
$region0: #{vit_forward.14}
  #allocation0 [shape = 'u32[]', space=smem, size = 0x4, offset = 0x4, fixed_abs, tag = 'smem constant byte address 0x4 - core index']
  #allocation1 [shape = 'u32[72,128]{1,0:T(1,128)}', space=vmem, size = 0x9000, scoped, tag = 'internal scratch']
  #allocation2 [shape = 'f32[34,32]{1,0:T(8,128)}', space=vmem, size = 0x5000, scoped, tag = 'scratch operand']
  %s0 = inlined_call_operand.vmem [shape: f32[34,32], index: 0, kind: input, shape index: {}]
  %s1 = inlined_call_operand.vmem [shape: f32[1,32,32], index: 1, kind: input, shape index: {}]
  %s2 = inlined_call_operand.vmem [shape: f32[34,32], index: 2, kind: input, shape index: {}]
  %s3 = inlined_call_operand.vmem [shape: f32[1,32], index: 3, kind: input, shape index: {}]
  %s4 = inlined_call_operand.vmem [shape: f32[1,32], index: 4, kind: input, shape index: {}]
  %s5 = inlined_call_operand.vmem [shape: f32[1,34,32], index: 5, kind: output, shape index: {}]
  %s6 = sld [smem:[#allocation0]]
  $region38: #{vit_forward.14} parent=0
    _
  %s8 = ssub.s32 1, %s6
  %s9 = scalar_select 0, %s8, %s6
  // Predicated region
  $region2: #{vit_forward.14} parent=0 // pred_check
    _
  $region3: #{vit_forward.14} parent=0 // pred_check_branch
    %11 = sbr.rel (0) target = $region5
  $region4: #{vit_forward.14} parent=0 // pred_region
    _
  $region5: #{vit_forward.14} parent=0 // pred_fallthru
    _
  // Predicated region
  $region6: #{vit_forward.14} parent=0 // pred_check
    _
  $region7: #{vit_forward.14} parent=0 // pred_check_branch
    %13 = sbr.rel (0) target = $region9
  $region8: #{vit_forward.14} parent=0 // pred_region
    _
  $region9: #{vit_forward.14} parent=0 // pred_fallthru
    _
  // Predicated region
  $region10: #{vit_forward.14} parent=0 // pred_check
    _
  $region11: #{vit_forward.14} parent=0 // pred_check_branch
    %15 = sbr.rel (0) target = $region13
  $region12: #{vit_forward.14} parent=0 // pred_region
    _
  $region13: #{vit_forward.14} parent=0 // pred_fallthru
    _
  // Predicated region
  $region14: #{vit_forward.14} parent=0 // pred_check
    _
  $region15: #{vit_forward.14} parent=0 // pred_check_branch
    %17 = sbr.rel (0) target = $region17
  $region16: #{vit_forward.14} parent=0 // pred_region
    _
  $region17: #{vit_forward.14} parent=0 // pred_fallthru
    _
  // Predicated region
  $region18: #{vit_forward.14} parent=0 // pred_check
    _
  $region19: #{vit_forward.14} parent=0 // pred_check_branch
    %19 = sbr.rel (0) target = $region21
  $region20: #{vit_forward.14} parent=0 // pred_region
    _
  $region21: #{vit_forward.14} parent=0 // pred_fallthru
    _
  %p21 = scmp.eq.s32.totalorder 0, 0
  // Predicated region
  $region22: #{vit_forward.14} parent=0 // pred_check
    %p22 = pneg %p21
  $region23: #{vit_forward.14} parent=0 // pred_check_branch
    %24 = sbr.rel (%p22) target = $region25
  $region24: #{vit_forward.14} parent=0 // pred_region
    %vm25 = vcmask 261120
    %26 = vst.msk [vmem:[#allocation2] sm:$0xff] %vm25, 0.0
    %27 = vst.msk [vmem:[#allocation2 + $0x8] sm:$0xff] %vm25, 0.0
    %28 = vst.msk [vmem:[#allocation2 + $0x10] sm:$0xff] %vm25, 0.0
    %29 = vst.msk [vmem:[#allocation2 + $0x18] sm:$0xff] %vm25, 0.0
    %vm30 = vcmask 254976
    %31 = vst.msk [vmem:[#allocation2 + $0x20] sm:$0x3] %vm30, 0.0
  $region25: #{vit_forward.14} parent=0 // pred_fallthru
    _
  %v32 = vld [vmem:[#allocation2] sm:$0xff]
  %v33 = vld [vmem:[#allocation2 + $0x8] sm:$0xff]
  %v34 = vld [vmem:[#allocation2 + $0x10] sm:$0xff]
  %v35 = vld [vmem:[#allocation2 + $0x18] sm:$0xff]
  %v36 = vld [vmem:[#allocation2 + $0x20] sm:$0x3]
  %v37 = vld [vmem:[%s0] sm:$0xff]
  %v38 = vld [vmem:[%s0 + $0x8] sm:$0xff]
  %v39 = vld [vmem:[%s0 + $0x10] sm:$0xff]
  %v40 = vld [vmem:[%s0 + $0x18] sm:$0xff]
  %v41 = vld [vmem:[%s0 + $0x20] sm:$0x3]
  %v42 = vpack.c.bf16 %v38, %v37
  %v43 = vpack.c.bf16 %v40, %v39
  %v44 = vpack.c.bf16 %v41, %v41
  %v45 = vld [vmem:[%s1] sm:$0xff]
  %v46 = vld [vmem:[%s1 + $0x8] sm:$0xff]
  %v47 = vld [vmem:[%s1 + $0x10] sm:$0xff]
  %v48 = vld [vmem:[%s1 + $0x18] sm:$0xff]
  %v49 = vpack.c.bf16 %v46, %v45
  %v50 = vpack.c.bf16 %v48, %v47
  %vm51 = vcmask 261120
  %v53 = vsel %vm51, %v42, 0
  %v56 = vsel %vm51, %v43, 0
  %v59 = vsel %vm51, %v44, 0
  %61 = vmatpush.bf16.msra.mxu0 0
  %62 = vmatpush.bf16.msra.mxu0 0
  %63 = vmatpush.bf16.msra.mxu0 0
  %64 = vmatpush.bf16.msra.mxu0 0
  %65 = vmatpush.bf16.msra.mxu0 0
  %66 = vmatpush.bf16.msra.mxu0 0
  %67 = vmatpush.bf16.msra.mxu0 %v50
  %68 = vmatpush.bf16.msra.mxu0 %v49
  %69 = vmatmul.bf16.gmra.mxu0 %v53
  %v70 = vpop.f32.mrf.mxu0
  %v71 = vadd.f32 0.0, %v70
  %v72 = vpop.f32.mrf.mxu0
  %v73 = vadd.f32 0.0, %v72
  %74 = vmatmul.bf16.gmra.mxu0 %v56
  %v75 = vpop.f32.mrf.mxu0
  %v76 = vadd.f32 0.0, %v75
  %v77 = vpop.f32.mrf.mxu0
  %v78 = vadd.f32 0.0, %v77
  %79 = vmatmul.bf16.gmra.mxu0 %v59
  %v80 = vpop.f32.mrf.mxu0
  %v81 = vadd.f32 0.0, %v80
  %v82 = vpop.f32.mrf.mxu0
  %83 = vdwg.mxu0
  %v84 = vadd.f32 %v32, %v71
  %v85 = vadd.f32 %v33, %v73
  %v86 = vadd.f32 %v34, %v76
  %v87 = vadd.f32 %v35, %v78
  %v88 = vadd.f32 %v36, %v81
  %89 = vst.msk [vmem:[#allocation2] sm:$0xff] %vm51, %v84
  %90 = vst.msk [vmem:[#allocation2 + $0x8] sm:$0xff] %vm51, %v85
  %91 = vst.msk [vmem:[#allocation2 + $0x10] sm:$0xff] %vm51, %v86
  %92 = vst.msk [vmem:[#allocation2 + $0x18] sm:$0xff] %vm51, %v87
  %vm93 = vcmask 254976
  %94 = vst.msk [vmem:[#allocation2 + $0x20] sm:$0x3] %vm93, %v88
  // Predicated region
  $region26: #{vit_forward.14} parent=0 // pred_check
    %p95 = pneg %p21
  $region27: #{vit_forward.14} parent=0 // pred_check_branch
    %97 = sbr.rel (%p95) target = $region29
  $region28: #{vit_forward.14} parent=0 // pred_region
    %v98 = vld [vmem:[#allocation2] sm:$0xff]
    %v99 = vld [vmem:[#allocation2 + $0x8] sm:$0xff]
    %v100 = vld [vmem:[#allocation2 + $0x10] sm:$0xff]
    %v101 = vld [vmem:[#allocation2 + $0x18] sm:$0xff]
    %v102 = vld [vmem:[#allocation2 + $0x20] sm:$0x3]
    %v103 = vld [vmem:[%s2] sm:$0xff]
    %v104 = vld [vmem:[%s2 + $0x8] sm:$0xff]
    %v105 = vld [vmem:[%s2 + $0x10] sm:$0xff]
    %v106 = vld [vmem:[%s2 + $0x18] sm:$0xff]
    %v107 = vld [vmem:[%s2 + $0x20] sm:$0x3]
    %v108 = vadd.f32 %v98, %v103
    %v109 = vadd.f32 %v99, %v104
    %v110 = vadd.f32 %v100, %v105
    %v111 = vadd.f32 %v101, %v106
    %v112 = vadd.f32 %v102, %v107
    %v113 = vsel %vm51, %v108, 0.0
    %114 = vadd.xlane.f32.xlu0 %v113
    %v115 = vpop.xlane.xlu0 %114
    %v116 = vsel %vm51, %v109, 0.0
    %117 = vadd.xlane.f32.xlu0 %v116
    %v118 = vpop.xlane.xlu0 %117
    %v119 = vsel %vm51, %v110, 0.0
    %120 = vadd.xlane.f32.xlu0 %v119
    %v121 = vpop.xlane.xlu0 %120
    %v122 = vsel %vm51, %v111, 0.0
    %123 = vadd.xlane.f32.xlu0 %v122
    %v124 = vpop.xlane.xlu0 %123
    %v125 = vsel %vm93, %v112, 0.0
    %126 = vadd.xlane.f32.xlu0 %v125
    %v127 = vpop.xlane.xlu0 %126
    %v128 = vrcp.pop 32.0
    %v129 = vmul.f32 32.0, %v128
    %v130 = vsub.f32 1.0, %v129
    %v131 = vmul.f32 %v128, %v130
    %v132 = vadd.f32 %v128, %v131
    %vm133 = vweird.f32 %v128
    %v134 = vsel %vm133, %v128, %v132
    %v135 = vmul.f32 %v115, %v134
    %v136 = vmul.f32 %v118, %v134
    %v137 = vmul.f32 %v121, %v134
    %v138 = vmul.f32 %v124, %v134
    %v139 = vmul.f32 %v127, %v134
    %v140 = vmul.f32 %v108, %v108
    %v141 = vmul.f32 %v109, %v109
    %v142 = vmul.f32 %v110, %v110
    %v143 = vmul.f32 %v111, %v111
    %v144 = vmul.f32 %v112, %v112
    %v145 = vsel %vm51, %v140, 0.0
    %146 = vadd.xlane.f32.xlu0 %v145
    %v147 = vpop.xlane.xlu0 %146
    %v148 = vsel %vm51, %v141, 0.0
    %149 = vadd.xlane.f32.xlu0 %v148
    %v150 = vpop.xlane.xlu0 %149
    %v151 = vsel %vm51, %v142, 0.0
    %152 = vadd.xlane.f32.xlu0 %v151
    %v153 = vpop.xlane.xlu0 %152
    %v154 = vsel %vm51, %v143, 0.0
    %155 = vadd.xlane.f32.xlu0 %v154
    %v156 = vpop.xlane.xlu0 %155
    %v157 = vsel %vm93, %v144, 0.0
    %158 = vadd.xlane.f32.xlu0 %v157
    %v159 = vpop.xlane.xlu0 %158
    %v160 = vmul.f32 %v147, %v134
    %v161 = vmul.f32 %v150, %v134
    %v162 = vmul.f32 %v153, %v134
    %v163 = vmul.f32 %v156, %v134
    %v164 = vmul.f32 %v159, %v134
    %v165 = vmul.f32 %v135, %v135
    %v166 = vmul.f32 %v136, %v136
    %v167 = vmul.f32 %v137, %v137
    %v168 = vmul.f32 %v138, %v138
    %v169 = vmul.f32 %v139, %v139
    %v170 = vsub.f32 %v160, %v165
    %v171 = vsub.f32 %v161, %v166
    %v172 = vsub.f32 %v162, %v167
    %v173 = vsub.f32 %v163, %v168
    %v174 = vsub.f32 %v164, %v169
    %v175 = vsub.f32 %v108, %v135
    %v176 = vsub.f32 %v109, %v136
    %v177 = vsub.f32 %v110, %v137
    %v178 = vsub.f32 %v111, %v138
    %v179 = vsub.f32 %v112, %v139
    %v180 = vadd.f32 %v170, 1e-05
    %v181 = vadd.f32 %v171, 1e-05
    %v182 = vadd.f32 %v172, 1e-05
    %v183 = vadd.f32 %v173, 1e-05
    %v184 = vadd.f32 %v174, 1e-05
    %v185 = vrsqrt.pop %v180
    %v186 = vmul.f32 %v185, %v180
    %v187 = vmul.f32 %v186, %v185
    %v188 = vmul.f32 0.5, %v187
    %v189 = vsub.f32 1.5, %v188
    %v190 = vmul.f32 %v185, %v189
    %vm191 = vweird.f32 %v180
    %vm192 = vweird.f32 %v185
    %vm193 = vmor %vm191, %vm192
    %v194 = vsel %vm193, %v185, %v190
    %v195 = vrsqrt.pop %v181
    %v196 = vmul.f32 %v195, %v181
    %v197 = vmul.f32 %v196, %v195
    %v198 = vmul.f32 0.5, %v197
    %v199 = vsub.f32 1.5, %v198
    %v200 = vmul.f32 %v195, %v199
    %vm201 = vweird.f32 %v181
    %vm202 = vweird.f32 %v195
    %vm203 = vmor %vm201, %vm202
    %v204 = vsel %vm203, %v195, %v200
    %v205 = vrsqrt.pop %v182
    %v206 = vmul.f32 %v205, %v182
    %v207 = vmul.f32 %v206, %v205
    %v208 = vmul.f32 0.5, %v207
    %v209 = vsub.f32 1.5, %v208
    %v210 = vmul.f32 %v205, %v209
    %vm211 = vweird.f32 %v182
    %vm212 = vweird.f32 %v205
    %vm213 = vmor %vm211, %vm212
    %v214 = vsel %vm213, %v205, %v210
    %v215 = vrsqrt.pop %v183
    %v216 = vmul.f32 %v215, %v183
    %v217 = vmul.f32 %v216, %v215
    %v218 = vmul.f32 0.5, %v217
    %v219 = vsub.f32 1.5, %v218
    %v220 = vmul.f32 %v215, %v219
    %vm221 = vweird.f32 %v183
    %vm222 = vweird.f32 %v215
    %vm223 = vmor %vm221, %vm222
    %v224 = vsel %vm223, %v215, %v220
    %v225 = vrsqrt.pop %v184
    %v226 = vmul.f32 %v225, %v184
    %v227 = vmul.f32 %v226, %v225
    %v228 = vmul.f32 0.5, %v227
    %v229 = vsub.f32 1.5, %v228
    %v230 = vmul.f32 %v225, %v229
    %vm231 = vweird.f32 %v184
    %vm232 = vweird.f32 %v225
    %vm233 = vmor %vm231, %vm232
    %v234 = vsel %vm233, %v225, %v230
    %v235 = vmul.f32 %v175, %v194
    %v236 = vmul.f32 %v176, %v204
    %v237 = vmul.f32 %v177, %v214
    %v238 = vmul.f32 %v178, %v224
    %v239 = vmul.f32 %v179, %v234
    %v240 = vld [vmem:[%s3] sm:$0x1]
    %v242 = vperm.slane %v240, 0
    %v244 = vmul.f32 %v235, %v242
    %v245 = vmul.f32 %v236, %v242
    %v246 = vmul.f32 %v237, %v242
    %v247 = vmul.f32 %v238, %v242
    %v248 = vmul.f32 %v239, %v242
    %v249 = vld [vmem:[%s4] sm:$0x1]
    %v251 = vperm.slane %v249, 0
    %v253 = vadd.f32 %v244, %v251
    %v254 = vadd.f32 %v245, %v251
    %v255 = vadd.f32 %v246, %v251
    %v256 = vadd.f32 %v247, %v251
    %v257 = vadd.f32 %v248, %v251
    %258 = vst.msk [vmem:[%s5] sm:$0xff] %vm51, %v253
    %259 = vst.msk [vmem:[%s5 + $0x8] sm:$0xff] %vm51, %v254
    %260 = vst.msk [vmem:[%s5 + $0x10] sm:$0xff] %vm51, %v255
    %261 = vst.msk [vmem:[%s5 + $0x18] sm:$0xff] %vm51, %v256
    %262 = vst.msk [vmem:[%s5 + $0x20] sm:$0x3] %vm93, %v257
  $region29: #{vit_forward.14} parent=0 // pred_fallthru
    _
  // Predicated region
  $region30: #{vit_forward.14} parent=0 // pred_check
    _
  $region31: #{vit_forward.14} parent=0 // pred_check_branch
    %264 = sbr.rel (0) target = $region33
  $region32: #{vit_forward.14} parent=0 // pred_region
    _
  $region33: #{vit_forward.14} parent=0 // pred_fallthru
    _
  // Predicated region
  $region34: #{vit_forward.14} parent=0 // pred_check
    _
  $region35: #{vit_forward.14} parent=0 // pred_check_branch
    %266 = sbr.rel (0) target = $region37
  $region36: #{vit_forward.14} parent=0 // pred_region
    _
  $region37: #{vit_forward.14} parent=0 // pred_fallthru
    _

// kernel: vit_forward.15
$region0: #{vit_forward.15}
  #allocation0 [shape = 'u32[]', space=smem, size = 0x4, offset = 0x4, fixed_abs, tag = 'smem constant byte address 0x4 - core index']
  #allocation1 [shape = 'u32[72,128]{1,0:T(1,128)}', space=vmem, size = 0x9000, scoped, tag = 'internal scratch']
  #allocation2 [shape = 'f32[34,64]{1,0:T(8,128)}', space=vmem, size = 0x5000, scoped, tag = 'scratch operand']
  %s0 = inlined_call_operand.vmem [shape: f32[34,32], index: 0, kind: input, shape index: {}]
  %s1 = inlined_call_operand.vmem [shape: f32[1,32,64], index: 1, kind: input, shape index: {}]
  %s2 = inlined_call_operand.vmem [shape: f32[1,1,64], index: 2, kind: input, shape index: {}]
  %s3 = inlined_call_operand.vmem [shape: f32[1,34,64], index: 3, kind: output, shape index: {}]
  %s4 = sld [smem:[#allocation0]]
  $region30: #{vit_forward.15} parent=0
    _
  %s6 = ssub.s32 1, %s4
  %s7 = scalar_select 0, %s6, %s4
  // Predicated region
  $region2: #{vit_forward.15} parent=0 // pred_check
    _
  $region3: #{vit_forward.15} parent=0 // pred_check_branch
    %9 = sbr.rel (0) target = $region5
  $region4: #{vit_forward.15} parent=0 // pred_region
    _
  $region5: #{vit_forward.15} parent=0 // pred_fallthru
    _
  // Predicated region
  $region6: #{vit_forward.15} parent=0 // pred_check
    _
  $region7: #{vit_forward.15} parent=0 // pred_check_branch
    %11 = sbr.rel (0) target = $region9
  $region8: #{vit_forward.15} parent=0 // pred_region
    _
  $region9: #{vit_forward.15} parent=0 // pred_fallthru
    _
  // Predicated region
  $region10: #{vit_forward.15} parent=0 // pred_check
    _
  $region11: #{vit_forward.15} parent=0 // pred_check_branch
    %13 = sbr.rel (0) target = $region13
  $region12: #{vit_forward.15} parent=0 // pred_region
    _
  $region13: #{vit_forward.15} parent=0 // pred_fallthru
    _
  %p15 = scmp.eq.s32.totalorder 0, 0
  // Predicated region
  $region14: #{vit_forward.15} parent=0 // pred_check
    %p16 = pneg %p15
  $region15: #{vit_forward.15} parent=0 // pred_check_branch
    %18 = sbr.rel (%p16) target = $region17
  $region16: #{vit_forward.15} parent=0 // pred_region
    %vm19 = vcmask 523264
    %20 = vst.msk [vmem:[#allocation2] sm:$0xff] %vm19, 0.0
    %21 = vst.msk [vmem:[#allocation2 + $0x8] sm:$0xff] %vm19, 0.0
    %22 = vst.msk [vmem:[#allocation2 + $0x10] sm:$0xff] %vm19, 0.0
    %23 = vst.msk [vmem:[#allocation2 + $0x18] sm:$0xff] %vm19, 0.0
    %vm24 = vcmask 517120
    %25 = vst.msk [vmem:[#allocation2 + $0x20] sm:$0x3] %vm24, 0.0
  $region17: #{vit_forward.15} parent=0 // pred_fallthru
    _
  %v26 = vld [vmem:[#allocation2] sm:$0xff]
  %v27 = vld [vmem:[#allocation2 + $0x8] sm:$0xff]
  %v28 = vld [vmem:[#allocation2 + $0x10] sm:$0xff]
  %v29 = vld [vmem:[#allocation2 + $0x18] sm:$0xff]
  %v30 = vld [vmem:[#allocation2 + $0x20] sm:$0x3]
  %v31 = vld [vmem:[%s0] sm:$0xff]
  %v32 = vld [vmem:[%s0 + $0x8] sm:$0xff]
  %v33 = vld [vmem:[%s0 + $0x10] sm:$0xff]
  %v34 = vld [vmem:[%s0 + $0x18] sm:$0xff]
  %v35 = vld [vmem:[%s0 + $0x20] sm:$0x3]
  %v36 = vpack.c.bf16 %v32, %v31
  %v37 = vpack.c.bf16 %v34, %v33
  %v38 = vpack.c.bf16 %v35, %v35
  %v39 = vld [vmem:[%s1] sm:$0xff]
  %v40 = vld [vmem:[%s1 + $0x8] sm:$0xff]
  %v41 = vld [vmem:[%s1 + $0x10] sm:$0xff]
  %v42 = vld [vmem:[%s1 + $0x18] sm:$0xff]
  %v43 = vpack.c.bf16 %v40, %v39
  %v44 = vpack.c.bf16 %v42, %v41
  %vm45 = vcmask 261120
  %v47 = vsel %vm45, %v36, 0
  %v50 = vsel %vm45, %v37, 0
  %v53 = vsel %vm45, %v38, 0
  %55 = vmatpush.bf16.msra.mxu0 0
  %56 = vmatpush.bf16.msra.mxu0 0
  %57 = vmatpush.bf16.msra.mxu0 0
  %58 = vmatpush.bf16.msra.mxu0 0
  %59 = vmatpush.bf16.msra.mxu0 0
  %60 = vmatpush.bf16.msra.mxu0 0
  %61 = vmatpush.bf16.msra.mxu0 %v44
  %62 = vmatpush.bf16.msra.mxu0 %v43
  %63 = vmatmul.bf16.gmra.mxu0 %v47
  %v64 = vpop.f32.mrf.mxu0
  %v65 = vadd.f32 0.0, %v64
  %v66 = vpop.f32.mrf.mxu0
  %v67 = vadd.f32 0.0, %v66
  %68 = vmatmul.bf16.gmra.mxu0 %v50
  %v69 = vpop.f32.mrf.mxu0
  %v70 = vadd.f32 0.0, %v69
  %v71 = vpop.f32.mrf.mxu0
  %v72 = vadd.f32 0.0, %v71
  %73 = vmatmul.bf16.gmra.mxu0 %v53
  %v74 = vpop.f32.mrf.mxu0
  %v75 = vadd.f32 0.0, %v74
  %v76 = vpop.f32.mrf.mxu0
  %77 = vdwg.mxu0
  %v78 = vadd.f32 %v26, %v65
  %v79 = vadd.f32 %v27, %v67
  %v80 = vadd.f32 %v28, %v70
  %v81 = vadd.f32 %v29, %v72
  %v82 = vadd.f32 %v30, %v75
  %vm83 = vcmask 523264
  %84 = vst.msk [vmem:[#allocation2] sm:$0xff] %vm83, %v78
  %85 = vst.msk [vmem:[#allocation2 + $0x8] sm:$0xff] %vm83, %v79
  %86 = vst.msk [vmem:[#allocation2 + $0x10] sm:$0xff] %vm83, %v80
  %87 = vst.msk [vmem:[#allocation2 + $0x18] sm:$0xff] %vm83, %v81
  %vm88 = vcmask 517120
  %89 = vst.msk [vmem:[#allocation2 + $0x20] sm:$0x3] %vm88, %v82
  // Predicated region
  $region18: #{vit_forward.15} parent=0 // pred_check
    %p90 = pneg %p15
  $region19: #{vit_forward.15} parent=0 // pred_check_branch
    %92 = sbr.rel (%p90) target = $region21
  $region20: #{vit_forward.15} parent=0 // pred_region
    %v93 = vld [vmem:[#allocation2] sm:$0xff]
    %v94 = vld [vmem:[#allocation2 + $0x8] sm:$0xff]
    %v95 = vld [vmem:[#allocation2 + $0x10] sm:$0xff]
    %v96 = vld [vmem:[#allocation2 + $0x18] sm:$0xff]
    %v97 = vld [vmem:[#allocation2 + $0x20] sm:$0x3]
    %v98 = vld [vmem:[%s2] sm:$0x1]
    %v100 = vperm.slane %v98, 0
    %v102 = vadd.f32 %v93, %v100
    %v103 = vadd.f32 %v94, %v100
    %v104 = vadd.f32 %v95, %v100
    %v105 = vadd.f32 %v96, %v100
    %v106 = vadd.f32 %v97, %v100
    %v107 = vmul.f32 %v102, 0.5
    %v108 = vmul.f32 %v103, 0.5
    %v109 = vmul.f32 %v104, 0.5
    %v110 = vmul.f32 %v105, 0.5
    %v111 = vmul.f32 %v106, 0.5
    %v112 = vmul.f32 %v102, 0.70710677
    %v113 = vmul.f32 %v103, 0.70710677
    %v114 = vmul.f32 %v104, 0.70710677
    %v115 = vmul.f32 %v105, 0.70710677
    %v116 = vmul.f32 %v106, 0.70710677
    %v117 = vmul.f32 %v112, %v112
    %v118 = vmin.f32 16.0, %v117
    %v119 = vmul.f32 %v118, 2.1237322e-06
    %v120 = vadd.f32 %v119, 0.00028619796
    %v121 = vmul.f32 %v118, %v120
    %v122 = vadd.f32 %v121, 0.0036580483
    %v123 = vmul.f32 %v118, %v122
    %v124 = vadd.f32 %v123, 0.05243302
    %v125 = vmul.f32 %v118, %v124
    %v126 = vadd.f32 %v125, 0.18741608
    %v127 = vmul.f32 %v118, %v126
    %v128 = vadd.f32 %v127, 1.1283791
    %v129 = vmul.f32 %v112, %v128
    %v130 = vmul.f32 %v118, 3.8918573e-05
    %v131 = vadd.f32 %v130, 0.001143296
    %v132 = vmul.f32 %v118, %v131
    %v133 = vadd.f32 %v132, 0.014752088
    %v134 = vmul.f32 %v118, %v133
    %v135 = vadd.f32 %v134, 0.112945676
    %v136 = vmul.f32 %v118, %v135
    %v137 = vadd.f32 %v136, 0.4994258
    %v138 = vmul.f32 %v118, %v137
    %v139 = vadd.f32 %v138, 1.0
    %v140 = vrcp.pop %v139
    %v141 = vmul.f32 %v139, %v140
    %v142 = vsub.f32 1.0, %v141
    %v143 = vmul.f32 %v140, %v142
    %v144 = vadd.f32 %v140, %v143
    %vm145 = vweird.f32 %v139
    %vm146 = vweird.f32 %v140
    %vm147 = vmor %vm145, %vm146
    %v148 = vsel %vm147, %v140, %v144
    %v149 = vand.u32 2147483647, %v139
    %vm150 = vcmp.eq.f32.partialorder %v149, 8.507059e+37
    %v151 = vand.u32 %v139, 2147483648
    %v152 = vor.u32 1.1754944e-38, %v151
    %v153 = vsel %vm150, %v152, %v148
    %v154 = vmul.f32 %v129, %v153
    %v155 = vmin.f32 %v154, 1.0
    %v156 = vmax.f32 %v155, -1.0
    %v157 = vmul.f32 %v113, %v113
    %v158 = vmin.f32 16.0, %v157
    %v159 = vmul.f32 %v158, 2.1237322e-06
    %v160 = vadd.f32 %v159, 0.00028619796
    %v161 = vmul.f32 %v158, %v160
    %v162 = vadd.f32 %v161, 0.0036580483
    %v163 = vmul.f32 %v158, %v162
    %v164 = vadd.f32 %v163, 0.05243302
    %v165 = vmul.f32 %v158, %v164
    %v166 = vadd.f32 %v165, 0.18741608
    %v167 = vmul.f32 %v158, %v166
    %v168 = vadd.f32 %v167, 1.1283791
    %v169 = vmul.f32 %v113, %v168
    %v170 = vmul.f32 %v158, 3.8918573e-05
    %v171 = vadd.f32 %v170, 0.001143296
    %v172 = vmul.f32 %v158, %v171
    %v173 = vadd.f32 %v172, 0.014752088
    %v174 = vmul.f32 %v158, %v173
    %v175 = vadd.f32 %v174, 0.112945676
    %v176 = vmul.f32 %v158, %v175
    %v177 = vadd.f32 %v176, 0.4994258
    %v178 = vmul.f32 %v158, %v177
    %v179 = vadd.f32 %v178, 1.0
    %v180 = vrcp.pop %v179
    %v181 = vmul.f32 %v179, %v180
    %v182 = vsub.f32 1.0, %v181
    %v183 = vmul.f32 %v180, %v182
    %v184 = vadd.f32 %v180, %v183
    %vm185 = vweird.f32 %v179
    %vm186 = vweird.f32 %v180
    %vm187 = vmor %vm185, %vm186
    %v188 = vsel %vm187, %v180, %v184
    %v189 = vand.u32 2147483647, %v179
    %vm190 = vcmp.eq.f32.partialorder %v189, 8.507059e+37
    %v191 = vand.u32 %v179, 2147483648
    %v192 = vor.u32 1.1754944e-38, %v191
    %v193 = vsel %vm190, %v192, %v188
    %v194 = vmul.f32 %v169, %v193
    %v195 = vmin.f32 %v194, 1.0
    %v196 = vmax.f32 %v195, -1.0
    %v197 = vmul.f32 %v114, %v114
    %v198 = vmin.f32 16.0, %v197
    %v199 = vmul.f32 %v198, 2.1237322e-06
    %v200 = vadd.f32 %v199, 0.00028619796
    %v201 = vmul.f32 %v198, %v200
    %v202 = vadd.f32 %v201, 0.0036580483
    %v203 = vmul.f32 %v198, %v202
    %v204 = vadd.f32 %v203, 0.05243302
    %v205 = vmul.f32 %v198, %v204
    %v206 = vadd.f32 %v205, 0.18741608
    %v207 = vmul.f32 %v198, %v206
    %v208 = vadd.f32 %v207, 1.1283791
    %v209 = vmul.f32 %v114, %v208
    %v210 = vmul.f32 %v198, 3.8918573e-05
    %v211 = vadd.f32 %v210, 0.001143296
    %v212 = vmul.f32 %v198, %v211
    %v213 = vadd.f32 %v212, 0.014752088
    %v214 = vmul.f32 %v198, %v213
    %v215 = vadd.f32 %v214, 0.112945676
    %v216 = vmul.f32 %v198, %v215
    %v217 = vadd.f32 %v216, 0.4994258
    %v218 = vmul.f32 %v198, %v217
    %v219 = vadd.f32 %v218, 1.0
    %v220 = vrcp.pop %v219
    %v221 = vmul.f32 %v219, %v220
    %v222 = vsub.f32 1.0, %v221
    %v223 = vmul.f32 %v220, %v222
    %v224 = vadd.f32 %v220, %v223
    %vm225 = vweird.f32 %v219
    %vm226 = vweird.f32 %v220
    %vm227 = vmor %vm225, %vm226
    %v228 = vsel %vm227, %v220, %v224
    %v229 = vand.u32 2147483647, %v219
    %vm230 = vcmp.eq.f32.partialorder %v229, 8.507059e+37
    %v231 = vand.u32 %v219, 2147483648
    %v232 = vor.u32 1.1754944e-38, %v231
    %v233 = vsel %vm230, %v232, %v228
    %v234 = vmul.f32 %v209, %v233
    %v235 = vmin.f32 %v234, 1.0
    %v236 = vmax.f32 %v235, -1.0
    %v237 = vmul.f32 %v115, %v115
    %v238 = vmin.f32 16.0, %v237
    %v239 = vmul.f32 %v238, 2.1237322e-06
    %v240 = vadd.f32 %v239, 0.00028619796
    %v241 = vmul.f32 %v238, %v240
    %v242 = vadd.f32 %v241, 0.0036580483
    %v243 = vmul.f32 %v238, %v242
    %v244 = vadd.f32 %v243, 0.05243302
    %v245 = vmul.f32 %v238, %v244
    %v246 = vadd.f32 %v245, 0.18741608
    %v247 = vmul.f32 %v238, %v246
    %v248 = vadd.f32 %v247, 1.1283791
    %v249 = vmul.f32 %v115, %v248
    %v250 = vmul.f32 %v238, 3.8918573e-05
    %v251 = vadd.f32 %v250, 0.001143296
    %v252 = vmul.f32 %v238, %v251
    %v253 = vadd.f32 %v252, 0.014752088
    %v254 = vmul.f32 %v238, %v253
    %v255 = vadd.f32 %v254, 0.112945676
    %v256 = vmul.f32 %v238, %v255
    %v257 = vadd.f32 %v256, 0.4994258
    %v258 = vmul.f32 %v238, %v257
    %v259 = vadd.f32 %v258, 1.0
    %v260 = vrcp.pop %v259
    %v261 = vmul.f32 %v259, %v260
    %v262 = vsub.f32 1.0, %v261
    %v263 = vmul.f32 %v260, %v262
    %v264 = vadd.f32 %v260, %v263
    %vm265 = vweird.f32 %v259
    %vm266 = vweird.f32 %v260
    %vm267 = vmor %vm265, %vm266
    %v268 = vsel %vm267, %v260, %v264
    %v269 = vand.u32 2147483647, %v259
    %vm270 = vcmp.eq.f32.partialorder %v269, 8.507059e+37
    %v271 = vand.u32 %v259, 2147483648
    %v272 = vor.u32 1.1754944e-38, %v271
    %v273 = vsel %vm270, %v272, %v268
    %v274 = vmul.f32 %v249, %v273
    %v275 = vmin.f32 %v274, 1.0
    %v276 = vmax.f32 %v275, -1.0
    %v277 = vmul.f32 %v116, %v116
    %v278 = vmin.f32 16.0, %v277
    %v279 = vmul.f32 %v278, 2.1237322e-06
    %v280 = vadd.f32 %v279, 0.00028619796
    %v281 = vmul.f32 %v278, %v280
    %v282 = vadd.f32 %v281, 0.0036580483
    %v283 = vmul.f32 %v278, %v282
    %v284 = vadd.f32 %v283, 0.05243302
    %v285 = vmul.f32 %v278, %v284
    %v286 = vadd.f32 %v285, 0.18741608
    %v287 = vmul.f32 %v278, %v286
    %v288 = vadd.f32 %v287, 1.1283791
    %v289 = vmul.f32 %v116, %v288
    %v290 = vmul.f32 %v278, 3.8918573e-05
    %v291 = vadd.f32 %v290, 0.001143296
    %v292 = vmul.f32 %v278, %v291
    %v293 = vadd.f32 %v292, 0.014752088
    %v294 = vmul.f32 %v278, %v293
    %v295 = vadd.f32 %v294, 0.112945676
    %v296 = vmul.f32 %v278, %v295
    %v297 = vadd.f32 %v296, 0.4994258
    %v298 = vmul.f32 %v278, %v297
    %v299 = vadd.f32 %v298, 1.0
    %v300 = vrcp.pop %v299
    %v301 = vmul.f32 %v299, %v300
    %v302 = vsub.f32 1.0, %v301
    %v303 = vmul.f32 %v300, %v302
    %v304 = vadd.f32 %v300, %v303
    %vm305 = vweird.f32 %v299
    %vm306 = vweird.f32 %v300
    %vm307 = vmor %vm305, %vm306
    %v308 = vsel %vm307, %v300, %v304
    %v309 = vand.u32 2147483647, %v299
    %vm310 = vcmp.eq.f32.partialorder %v309, 8.507059e+37
    %v311 = vand.u32 %v299, 2147483648
    %v312 = vor.u32 1.1754944e-38, %v311
    %v313 = vsel %vm310, %v312, %v308
    %v314 = vmul.f32 %v289, %v313
    %v315 = vmin.f32 %v314, 1.0
    %v316 = vmax.f32 %v315, -1.0
    %v317 = vadd.f32 %v156, 1.0
    %v318 = vadd.f32 %v196, 1.0
    %v319 = vadd.f32 %v236, 1.0
    %v320 = vadd.f32 %v276, 1.0
    %v321 = vadd.f32 %v316, 1.0
    %v322 = vmul.f32 %v107, %v317
    %v323 = vmul.f32 %v108, %v318
    %v324 = vmul.f32 %v109, %v319
    %v325 = vmul.f32 %v110, %v320
    %v326 = vmul.f32 %v111, %v321
    %327 = vst.msk [vmem:[%s3] sm:$0xff] %vm83, %v322
    %328 = vst.msk [vmem:[%s3 + $0x8] sm:$0xff] %vm83, %v323
    %329 = vst.msk [vmem:[%s3 + $0x10] sm:$0xff] %vm83, %v324
    %330 = vst.msk [vmem:[%s3 + $0x18] sm:$0xff] %vm83, %v325
    %331 = vst.msk [vmem:[%s3 + $0x20] sm:$0x3] %vm88, %v326
  $region21: #{vit_forward.15} parent=0 // pred_fallthru
    _
  // Predicated region
  $region22: #{vit_forward.15} parent=0 // pred_check
    _
  $region23: #{vit_forward.15} parent=0 // pred_check_branch
    %333 = sbr.rel (0) target = $region25
  $region24: #{vit_forward.15} parent=0 // pred_region
    _
  $region25: #{vit_forward.15} parent=0 // pred_fallthru
    _
  // Predicated region
  $region26: #{vit_forward.15} parent=0 // pred_check
    _
  $region27: #{vit_forward.15} parent=0 // pred_check_branch
    %335 = sbr.rel (0) target = $region29
  $region28: #{vit_forward.15} parent=0 // pred_region
    _
  $region29: #{vit_forward.15} parent=0 // pred_fallthru
    _

// kernel: vit_forward.16
$region0: #{vit_forward.16}
  #allocation0 [shape = 'u32[]', space=smem, size = 0x4, offset = 0x4, fixed_abs, tag = 'smem constant byte address 0x4 - core index']
  #allocation1 [shape = 'u32[72,128]{1,0:T(1,128)}', space=vmem, size = 0x9000, scoped, tag = 'internal scratch']
  #allocation2 [shape = 'f32[34,32]{1,0:T(8,128)}', space=vmem, size = 0x5000, scoped, tag = 'scratch operand']
  %s0 = inlined_call_operand.vmem [shape: f32[34,64], index: 0, kind: input, shape index: {}]
  %s1 = inlined_call_operand.vmem [shape: f32[1,64,32], index: 1, kind: input, shape index: {}]
  %s2 = inlined_call_operand.vmem [shape: f32[1,1,32], index: 2, kind: input, shape index: {}]
  %s3 = inlined_call_operand.vmem [shape: f32[34,32], index: 3, kind: input, shape index: {}]
  %s4 = inlined_call_operand.vmem [shape: f32[1,32], index: 4, kind: input, shape index: {}]
  %s5 = inlined_call_operand.vmem [shape: f32[1,32], index: 5, kind: input, shape index: {}]
  %s6 = inlined_call_operand.vmem [shape: f32[1,34,32], index: 6, kind: output, shape index: {}]
  %s7 = sld [smem:[#allocation0]]
  $region42: #{vit_forward.16} parent=0
    _
  %s9 = ssub.s32 1, %s7
  %s10 = scalar_select 0, %s9, %s7
  // Predicated region
  $region2: #{vit_forward.16} parent=0 // pred_check
    _
  $region3: #{vit_forward.16} parent=0 // pred_check_branch
    %12 = sbr.rel (0) target = $region5
  $region4: #{vit_forward.16} parent=0 // pred_region
    _
  $region5: #{vit_forward.16} parent=0 // pred_fallthru
    _
  // Predicated region
  $region6: #{vit_forward.16} parent=0 // pred_check
    _
  $region7: #{vit_forward.16} parent=0 // pred_check_branch
    %14 = sbr.rel (0) target = $region9
  $region8: #{vit_forward.16} parent=0 // pred_region
    _
  $region9: #{vit_forward.16} parent=0 // pred_fallthru
    _
  // Predicated region
  $region10: #{vit_forward.16} parent=0 // pred_check
    _
  $region11: #{vit_forward.16} parent=0 // pred_check_branch
    %16 = sbr.rel (0) target = $region13
  $region12: #{vit_forward.16} parent=0 // pred_region
    _
  $region13: #{vit_forward.16} parent=0 // pred_fallthru
    _
  // Predicated region
  $region14: #{vit_forward.16} parent=0 // pred_check
    _
  $region15: #{vit_forward.16} parent=0 // pred_check_branch
    %18 = sbr.rel (0) target = $region17
  $region16: #{vit_forward.16} parent=0 // pred_region
    _
  $region17: #{vit_forward.16} parent=0 // pred_fallthru
    _
  // Predicated region
  $region18: #{vit_forward.16} parent=0 // pred_check
    _
  $region19: #{vit_forward.16} parent=0 // pred_check_branch
    %20 = sbr.rel (0) target = $region21
  $region20: #{vit_forward.16} parent=0 // pred_region
    _
  $region21: #{vit_forward.16} parent=0 // pred_fallthru
    _
  // Predicated region
  $region22: #{vit_forward.16} parent=0 // pred_check
    _
  $region23: #{vit_forward.16} parent=0 // pred_check_branch
    %22 = sbr.rel (0) target = $region25
  $region24: #{vit_forward.16} parent=0 // pred_region
    _
  $region25: #{vit_forward.16} parent=0 // pred_fallthru
    _
  %p24 = scmp.eq.s32.totalorder 0, 0
  // Predicated region
  $region26: #{vit_forward.16} parent=0 // pred_check
    %p25 = pneg %p24
  $region27: #{vit_forward.16} parent=0 // pred_check_branch
    %27 = sbr.rel (%p25) target = $region29
  $region28: #{vit_forward.16} parent=0 // pred_region
    %vm28 = vcmask 261120
    %29 = vst.msk [vmem:[#allocation2] sm:$0xff] %vm28, 0.0
    %30 = vst.msk [vmem:[#allocation2 + $0x8] sm:$0xff] %vm28, 0.0
    %31 = vst.msk [vmem:[#allocation2 + $0x10] sm:$0xff] %vm28, 0.0
    %32 = vst.msk [vmem:[#allocation2 + $0x18] sm:$0xff] %vm28, 0.0
    %vm33 = vcmask 254976
    %34 = vst.msk [vmem:[#allocation2 + $0x20] sm:$0x3] %vm33, 0.0
  $region29: #{vit_forward.16} parent=0 // pred_fallthru
    _
  %v35 = vld [vmem:[#allocation2] sm:$0xff]
  %v36 = vld [vmem:[#allocation2 + $0x8] sm:$0xff]
  %v37 = vld [vmem:[#allocation2 + $0x10] sm:$0xff]
  %v38 = vld [vmem:[#allocation2 + $0x18] sm:$0xff]
  %v39 = vld [vmem:[#allocation2 + $0x20] sm:$0x3]
  %v40 = vld [vmem:[%s0] sm:$0xff]
  %v41 = vld [vmem:[%s0 + $0x8] sm:$0xff]
  %v42 = vld [vmem:[%s0 + $0x10] sm:$0xff]
  %v43 = vld [vmem:[%s0 + $0x18] sm:$0xff]
  %v44 = vld [vmem:[%s0 + $0x20] sm:$0x3]
  %v45 = vpack.c.bf16 %v41, %v40
  %v46 = vpack.c.bf16 %v43, %v42
  %v47 = vpack.c.bf16 %v44, %v44
  %v48 = vld [vmem:[%s1] sm:$0xff]
  %v49 = vld [vmem:[%s1 + $0x8] sm:$0xff]
  %v50 = vld [vmem:[%s1 + $0x10] sm:$0xff]
  %v51 = vld [vmem:[%s1 + $0x18] sm:$0xff]
  %v52 = vld [vmem:[%s1 + $0x20] sm:$0xff]
  %v53 = vld [vmem:[%s1 + $0x28] sm:$0xff]
  %v54 = vld [vmem:[%s1 + $0x30] sm:$0xff]
  %v55 = vld [vmem:[%s1 + $0x38] sm:$0xff]
  %v56 = vpack.c.bf16 %v49, %v48
  %v57 = vpack.c.bf16 %v51, %v50
  %v58 = vpack.c.bf16 %v53, %v52
  %v59 = vpack.c.bf16 %v55, %v54
  %vm60 = vcmask 523264
  %v62 = vsel %vm60, %v45, 0
  %v65 = vsel %vm60, %v46, 0
  %v68 = vsel %vm60, %v47, 0
  %70 = vmatpush.bf16.msra.mxu0 0
  %71 = vmatpush.bf16.msra.mxu0 0
  %72 = vmatpush.bf16.msra.mxu0 0
  %73 = vmatpush.bf16.msra.mxu0 0
  %74 = vmatpush.bf16.msra.mxu0 %v59
  %75 = vmatpush.bf16.msra.mxu0 %v58
  %76 = vmatpush.bf16.msra.mxu0 %v57
  %77 = vmatpush.bf16.msra.mxu0 %v56
  %78 = vmatmul.bf16.gmra.mxu0 %v62
  %v79 = vpop.f32.mrf.mxu0
  %v80 = vadd.f32 0.0, %v79
  %v81 = vpop.f32.mrf.mxu0
  %v82 = vadd.f32 0.0, %v81
  %83 = vmatmul.bf16.gmra.mxu0 %v65
  %v84 = vpop.f32.mrf.mxu0
  %v85 = vadd.f32 0.0, %v84
  %v86 = vpop.f32.mrf.mxu0
  %v87 = vadd.f32 0.0, %v86
  %88 = vmatmul.bf16.gmra.mxu0 %v68
  %v89 = vpop.f32.mrf.mxu0
  %v90 = vadd.f32 0.0, %v89
  %v91 = vpop.f32.mrf.mxu0
  %92 = vdwg.mxu0
  %v93 = vadd.f32 %v35, %v80
  %v94 = vadd.f32 %v36, %v82
  %v95 = vadd.f32 %v37, %v85
  %v96 = vadd.f32 %v38, %v87
  %v97 = vadd.f32 %v39, %v90
  %vm98 = vcmask 261120
  %99 = vst.msk [vmem:[#allocation2] sm:$0xff] %vm98, %v93
  %100 = vst.msk [vmem:[#allocation2 + $0x8] sm:$0xff] %vm98, %v94
  %101 = vst.msk [vmem:[#allocation2 + $0x10] sm:$0xff] %vm98, %v95
  %102 = vst.msk [vmem:[#allocation2 + $0x18] sm:$0xff] %vm98, %v96
  %vm103 = vcmask 254976
  %104 = vst.msk [vmem:[#allocation2 + $0x20] sm:$0x3] %vm103, %v97
  // Predicated region
  $region30: #{vit_forward.16} parent=0 // pred_check
    %p105 = pneg %p24
  $region31: #{vit_forward.16} parent=0 // pred_check_branch
    %107 = sbr.rel (%p105) target = $region33
  $region32: #{vit_forward.16} parent=0 // pred_region
    %v108 = vld [vmem:[#allocation2] sm:$0xff]
    %v109 = vld [vmem:[#allocation2 + $0x8] sm:$0xff]
    %v110 = vld [vmem:[#allocation2 + $0x10] sm:$0xff]
    %v111 = vld [vmem:[#allocation2 + $0x18] sm:$0xff]
    %v112 = vld [vmem:[#allocation2 + $0x20] sm:$0x3]
    %v113 = vld [vmem:[%s2] sm:$0x1]
    %v115 = vperm.slane %v113, 0
    %v117 = vadd.f32 %v108, %v115
    %v118 = vadd.f32 %v109, %v115
    %v119 = vadd.f32 %v110, %v115
    %v120 = vadd.f32 %v111, %v115
    %v121 = vadd.f32 %v112, %v115
    %v122 = vld [vmem:[%s3] sm:$0xff]
    %v123 = vld [vmem:[%s3 + $0x8] sm:$0xff]
    %v124 = vld [vmem:[%s3 + $0x10] sm:$0xff]
    %v125 = vld [vmem:[%s3 + $0x18] sm:$0xff]
    %v126 = vld [vmem:[%s3 + $0x20] sm:$0x3]
    %v127 = vadd.f32 %v117, %v122
    %v128 = vadd.f32 %v118, %v123
    %v129 = vadd.f32 %v119, %v124
    %v130 = vadd.f32 %v120, %v125
    %v131 = vadd.f32 %v121, %v126
    %v132 = vsel %vm98, %v127, 0.0
    %133 = vadd.xlane.f32.xlu0 %v132
    %v134 = vpop.xlane.xlu0 %133
    %v135 = vsel %vm98, %v128, 0.0
    %136 = vadd.xlane.f32.xlu0 %v135
    %v137 = vpop.xlane.xlu0 %136
    %v138 = vsel %vm98, %v129, 0.0
    %139 = vadd.xlane.f32.xlu0 %v138
    %v140 = vpop.xlane.xlu0 %139
    %v141 = vsel %vm98, %v130, 0.0
    %142 = vadd.xlane.f32.xlu0 %v141
    %v143 = vpop.xlane.xlu0 %142
    %v144 = vsel %vm103, %v131, 0.0
    %145 = vadd.xlane.f32.xlu0 %v144
    %v146 = vpop.xlane.xlu0 %145
    %v147 = vrcp.pop 32.0
    %v148 = vmul.f32 32.0, %v147
    %v149 = vsub.f32 1.0, %v148
    %v150 = vmul.f32 %v147, %v149
    %v151 = vadd.f32 %v147, %v150
    %vm152 = vweird.f32 %v147
    %v153 = vsel %vm152, %v147, %v151
    %v154 = vmul.f32 %v134, %v153
    %v155 = vmul.f32 %v137, %v153
    %v156 = vmul.f32 %v140, %v153
    %v157 = vmul.f32 %v143, %v153
    %v158 = vmul.f32 %v146, %v153
    %v159 = vmul.f32 %v127, %v127
    %v160 = vmul.f32 %v128, %v128
    %v161 = vmul.f32 %v129, %v129
    %v162 = vmul.f32 %v130, %v130
    %v163 = vmul.f32 %v131, %v131
    %v164 = vsel %vm98, %v159, 0.0
    %165 = vadd.xlane.f32.xlu0 %v164
    %v166 = vpop.xlane.xlu0 %165
    %v167 = vsel %vm98, %v160, 0.0
    %168 = vadd.xlane.f32.xlu0 %v167
    %v169 = vpop.xlane.xlu0 %168
    %v170 = vsel %vm98, %v161, 0.0
    %171 = vadd.xlane.f32.xlu0 %v170
    %v172 = vpop.xlane.xlu0 %171
    %v173 = vsel %vm98, %v162, 0.0
    %174 = vadd.xlane.f32.xlu0 %v173
    %v175 = vpop.xlane.xlu0 %174
    %v176 = vsel %vm103, %v163, 0.0
    %177 = vadd.xlane.f32.xlu0 %v176
    %v178 = vpop.xlane.xlu0 %177
    %v179 = vmul.f32 %v166, %v153
    %v180 = vmul.f32 %v169, %v153
    %v181 = vmul.f32 %v172, %v153
    %v182 = vmul.f32 %v175, %v153
    %v183 = vmul.f32 %v178, %v153
    %v184 = vmul.f32 %v154, %v154
    %v185 = vmul.f32 %v155, %v155
    %v186 = vmul.f32 %v156, %v156
    %v187 = vmul.f32 %v157, %v157
    %v188 = vmul.f32 %v158, %v158
    %v189 = vsub.f32 %v179, %v184
    %v190 = vsub.f32 %v180, %v185
    %v191 = vsub.f32 %v181, %v186
    %v192 = vsub.f32 %v182, %v187
    %v193 = vsub.f32 %v183, %v188
    %v194 = vsub.f32 %v127, %v154
    %v195 = vsub.f32 %v128, %v155
    %v196 = vsub.f32 %v129, %v156
    %v197 = vsub.f32 %v130, %v157
    %v198 = vsub.f32 %v131, %v158
    %v199 = vadd.f32 %v189, 1e-05
    %v200 = vadd.f32 %v190, 1e-05
    %v201 = vadd.f32 %v191, 1e-05
    %v202 = vadd.f32 %v192, 1e-05
    %v203 = vadd.f32 %v193, 1e-05
    %v204 = vrsqrt.pop %v199
    %v205 = vmul.f32 %v204, %v199
    %v206 = vmul.f32 %v205, %v204
    %v207 = vmul.f32 0.5, %v206
    %v208 = vsub.f32 1.5, %v207
    %v209 = vmul.f32 %v204, %v208
    %vm210 = vweird.f32 %v199
    %vm211 = vweird.f32 %v204
    %vm212 = vmor %vm210, %vm211
    %v213 = vsel %vm212, %v204, %v209
    %v214 = vrsqrt.pop %v200
    %v215 = vmul.f32 %v214, %v200
    %v216 = vmul.f32 %v215, %v214
    %v217 = vmul.f32 0.5, %v216
    %v218 = vsub.f32 1.5, %v217
    %v219 = vmul.f32 %v214, %v218
    %vm220 = vweird.f32 %v200
    %vm221 = vweird.f32 %v214
    %vm222 = vmor %vm220, %vm221
    %v223 = vsel %vm222, %v214, %v219
    %v224 = vrsqrt.pop %v201
    %v225 = vmul.f32 %v224, %v201
    %v226 = vmul.f32 %v225, %v224
    %v227 = vmul.f32 0.5, %v226
    %v228 = vsub.f32 1.5, %v227
    %v229 = vmul.f32 %v224, %v228
    %vm230 = vweird.f32 %v201
    %vm231 = vweird.f32 %v224
    %vm232 = vmor %vm230, %vm231
    %v233 = vsel %vm232, %v224, %v229
    %v234 = vrsqrt.pop %v202
    %v235 = vmul.f32 %v234, %v202
    %v236 = vmul.f32 %v235, %v234
    %v237 = vmul.f32 0.5, %v236
    %v238 = vsub.f32 1.5, %v237
    %v239 = vmul.f32 %v234, %v238
    %vm240 = vweird.f32 %v202
    %vm241 = vweird.f32 %v234
    %vm242 = vmor %vm240, %vm241
    %v243 = vsel %vm242, %v234, %v239
    %v244 = vrsqrt.pop %v203
    %v245 = vmul.f32 %v244, %v203
    %v246 = vmul.f32 %v245, %v244
    %v247 = vmul.f32 0.5, %v246
    %v248 = vsub.f32 1.5, %v247
    %v249 = vmul.f32 %v244, %v248
    %vm250 = vweird.f32 %v203
    %vm251 = vweird.f32 %v244
    %vm252 = vmor %vm250, %vm251
    %v253 = vsel %vm252, %v244, %v249
    %v254 = vmul.f32 %v194, %v213
    %v255 = vmul.f32 %v195, %v223
    %v256 = vmul.f32 %v196, %v233
    %v257 = vmul.f32 %v197, %v243
    %v258 = vmul.f32 %v198, %v253
    %v259 = vld [vmem:[%s4] sm:$0x1]
    %v261 = vperm.slane %v259, 0
    %v263 = vmul.f32 %v254, %v261
    %v264 = vmul.f32 %v255, %v261
    %v265 = vmul.f32 %v256, %v261
    %v266 = vmul.f32 %v257, %v261
    %v267 = vmul.f32 %v258, %v261
    %v268 = vld [vmem:[%s5] sm:$0x1]
    %v270 = vperm.slane %v268, 0
    %v272 = vadd.f32 %v263, %v270
    %v273 = vadd.f32 %v264, %v270
    %v274 = vadd.f32 %v265, %v270
    %v275 = vadd.f32 %v266, %v270
    %v276 = vadd.f32 %v267, %v270
    %277 = vst.msk [vmem:[%s6] sm:$0xff] %vm98, %v272
    %278 = vst.msk [vmem:[%s6 + $0x8] sm:$0xff] %vm98, %v273
    %279 = vst.msk [vmem:[%s6 + $0x10] sm:$0xff] %vm98, %v274
    %280 = vst.msk [vmem:[%s6 + $0x18] sm:$0xff] %vm98, %v275
    %281 = vst.msk [vmem:[%s6 + $0x20] sm:$0x3] %vm103, %v276
  $region33: #{vit_forward.16} parent=0 // pred_fallthru
    _
  // Predicated region
  $region34: #{vit_forward.16} parent=0 // pred_check
    _
  $region35: #{vit_forward.16} parent=0 // pred_check_branch
    %283 = sbr.rel (0) target = $region37
  $region36: #{vit_forward.16} parent=0 // pred_region
    _
  $region37: #{vit_forward.16} parent=0 // pred_fallthru
    _
  // Predicated region
  $region38: #{vit_forward.16} parent=0 // pred_check
    _
  $region39: #{vit_forward.16} parent=0 // pred_check_branch
    %285 = sbr.rel (0) target = $region41
  $region40: #{vit_forward.16} parent=0 // pred_region
    _
  $region41: #{vit_forward.16} parent=0 // pred_fallthru
    _

</llo_original>
